<compile_context>
chip_gen: v5e
topology: v5e:2x2
jax: 0.10.0
libtpu: 0.0.40
codegen_flags: <defaults>
</compile_context>

<pallas_src>
import jax
import jax.numpy as jnp
from jax.experimental import pallas as pl
from jax.experimental.pallas import tpu as pltpu

INPUT_SIZE = 32
D_MODEL = 128
NHEAD = 8
HEAD_DIM = D_MODEL // NHEAD
DIM_FF = 256
NUM_LAYERS = 2
NUM_CLASSES = 2
LN_EPS = 1e-5


def _layer_norm(h, w, b):
    mu = jnp.mean(h, axis=-1, keepdims=True)
    var = jnp.mean((h - mu) ** 2, axis=-1, keepdims=True)
    return (h - mu) * jax.lax.rsqrt(var + LN_EPS) * w + b


def transformer_kernel(x_ref, head_sel_ref, head_sel_t_ref,
                       emb_w_ref, emb_b_ref,
                       wqkv_ref, bqkv_ref, wo_ref,
                       vec_d_ref,                      # (L, 6, D): bo|ln1_w|ln1_b|ln2_w|ln2_b|ff2_b
                       ff1_w_ref, ff1_b_ref, ff2_w_ref,
                       out_ref,                        # (1, TB, D) pooled slab
                       ctx_ref):                       # VMEM scratch (TB*S, D) f32
    TB, S, IN = x_ref.shape
    M = TB * S
    D, H = D_MODEL, NHEAD
    L = wqkv_ref.shape[0]
    bf16, f32 = jnp.bfloat16, jnp.float32

    E = head_sel_ref[...]        # (D, H) bf16, 0/1 head-selector
    ET = head_sel_t_ref[...]     # (H, D) bf16

    # Embedding linear on the whole batch tile: [TB*S, IN] @ [IN, D] + bias.
    x = x_ref[...].reshape(M, IN)                                   # bf16
    h = jnp.dot(x, emb_w_ref[...],
                preferred_element_type=f32) + emb_b_ref[...]        # (M, D) f32

    for l in range(L):  # static unroll over encoder layers
        vd = vec_d_ref[l]                                           # (6, D) f32

        # ---- fused QKV: one [TB*S,128]@[128,384] bf16 matmul ----
        # (1/sqrt(head_dim) already folded into wq/bq host-side.)
        qkv = jnp.dot(h.astype(bf16), wqkv_ref[l],
                      preferred_element_type=f32) + bqkv_ref[l]     # (M, 3D)
        q = qkv[:, :D]                      # 128-aligned lane slices (free)
        k = qkv[:, D:2 * D]
        v = qkv[:, 2 * D:]

        # ---- per-sequence S x S attention core (S<=16 head-selector form) ----
        for b in range(TB):  # static unroll; sublane-aligned slices (S mult. of 8)
            sl = slice(b * S, (b + 1) * S)
            qb, kb, vb = q[sl], k[sl], v[sl]
            # prod[q,k,d] = Q[q,d]*K[k,d];  s[q,k,h] = sum_d prod[q,k,d]*E[d,h]
            prod = qb[:, None, :] * kb[None, :, :]                  # (S, S, D) f32
            s = jnp.dot(prod.reshape(S * S, D).astype(bf16), E,
                        preferred_element_type=f32).reshape(S, S, H)
            # softmax over key axis (axis=1), f32, EUP reciprocal
            m = jnp.max(s, axis=1, keepdims=True)
            e = jnp.exp(s - m)
            p = e * pl.reciprocal(jnp.sum(e, axis=1, keepdims=True), approx=True)
            # weighted value sum for all heads at once (concat-head layout)
            pe = jnp.dot(p.reshape(S * S, H).astype(bf16), ET,
                         preferred_element_type=f32).reshape(S, S, D)
            ctx_ref[sl, :] = jnp.sum(pe * vb[None, :, :], axis=1)   # (S, D)

        # ---- output projection: single [TB*S,128]@[128,128] bf16 matmul ----
        attn = jnp.dot(ctx_ref[...].astype(bf16), wo_ref[l],
                       preferred_element_type=f32) + vd[0:1, :]     # + bo

        # post-norm residual #1 (f32)
        h = _layer_norm(h + attn, vd[1:2, :], vd[2:3, :])

        # ---- feed-forward (ReLU), bf16 matmuls / f32 acc ----
        ff = jnp.dot(h.astype(bf16), ff1_w_ref[l],
                     preferred_element_type=f32) + ff1_b_ref[l]
        ff = jnp.maximum(ff, 0.0)
        ff = jnp.dot(ff.astype(bf16), ff2_w_ref[l],
                     preferred_element_type=f32) + vd[5:6, :]       # + ff2_b

        # post-norm residual #2 (f32)
        h = _layer_norm(h + ff, vd[3:4, :], vd[4:5, :])

    # Mean-pool over sequence (static 1/S); stream the lane-dense pooled slab.
    pooled = jnp.sum(h.reshape(TB, S, D), axis=1) * (1.0 / S)       # (TB, D)
    out_ref[...] = pooled.reshape(1, TB, D).astype(out_ref.dtype)


def transformer_forward(x, params, *, target_rows=256):
    B, S, IN = x.shape
    D = D_MODEL
    bf16 = jnp.bfloat16
    scale = 1.0 / (HEAD_DIM ** 0.5)

    # Batch-tile size: target TB*S ~= 256 rows per MXU matmul, but keep the
    # grid >= 2 steps when B >= 2 so both v7x TensorCores get work.
    tb = min(max(1, target_rows // S), B)
    if B >= 2:
        tb = max(1, min(tb, (B + 1) // 2))
    num_tiles = pl.cdiv(B, tb)
    b_pad = num_tiles * tb
    if b_pad > B:
        x = jnp.pad(x, ((0, b_pad - B), (0, 0), (0, 0)))
    x = x.astype(bf16)                                  # halve the streamed DMA

    # ---- host-side weight packing / bf16 casting (outside the kernel) ----
    # 1/sqrt(head_dim) folded into wq/bq (commutes through the matmul).
    wqkv = jnp.concatenate([params['wq'] * scale, params['wk'], params['wv']],
                           axis=-1).astype(bf16)                    # (L, D, 3D)
    bqkv = jnp.concatenate([params['bq'] * scale, params['bk'], params['bv']],
                           axis=-1)                                 # (L, 1, 3D) f32
    vec_d = jnp.concatenate([params['bo'], params['ln1_w'], params['ln1_b'],
                             params['ln2_w'], params['ln2_b'], params['ff2_b']],
                            axis=1)                                 # (L, 6, D) f32
    emb_w = params['emb_w'].astype(bf16)
    wo = params['wo'].astype(bf16)
    ff1_w = params['ff1_w'].astype(bf16)
    ff2_w = params['ff2_w'].astype(bf16)

    # head-selector: E[d, h] = 1 iff lane d belongs to head h
    d_idx = jnp.arange(D)[:, None]
    h_idx = jnp.arange(NHEAD)[None, :]
    head_sel = (d_idx // HEAD_DIM == h_idx).astype(bf16)            # (D, H)
    head_sel_t = head_sel.T                                         # (H, D)

    args = (x, head_sel, head_sel_t, emb_w, params['emb_b'],
            wqkv, bqkv, wo, vec_d, ff1_w, params['ff1_b'], ff2_w)

    def resident(a):  # VMEM-resident weight: constant block index across grid
        nd = a.ndim
        return pl.BlockSpec(a.shape, lambda i, _nd=nd: (0,) * _nd)

    in_specs = ([pl.BlockSpec((tb, S, IN), lambda i: (i, 0, 0))]
                + [resident(a) for a in args[1:]])
    out_specs = pl.BlockSpec((1, tb, D), lambda i: (i, 0, 0))

    pooled = pl.pallas_call(
        transformer_kernel,
        out_shape=jax.ShapeDtypeStruct((num_tiles, tb, D), jnp.float32),
        grid_spec=pltpu.PrefetchScalarGridSpec(
            num_scalar_prefetch=0,
            grid=(num_tiles,),
            in_specs=in_specs,
            out_specs=out_specs,
            scratch_shapes=[pltpu.VMEM((tb * S, D), jnp.float32)]),
        compiler_params=pltpu.CompilerParams(
            dimension_semantics=("parallel",)),
    )(*args)

    pooled = pooled.reshape(b_pad, D)[:B]                           # (B, D) f32
    # Tiny lane-sparse classifier [B,128]@[128,2] stays in XLA (lane-dense
    # kernel output per the review).
    return pooled @ params['fc_w'] + params['fc_b'][0]


def init_params(key):
    L, D, F, IN, C = NUM_LAYERS, D_MODEL, DIM_FF, INPUT_SIZE, NUM_CLASSES
    keys = jax.random.split(key, 16)

    def w(k, shape, scale=0.02):
        return (scale * jax.random.normal(k, shape)).astype(jnp.float32)

    return dict(
        emb_w=w(keys[0], (IN, D)), emb_b=w(keys[1], (1, D)),
        wq=w(keys[2], (L, D, D)), bq=w(keys[3], (L, 1, D)),
        wk=w(keys[4], (L, D, D)), bk=w(keys[5], (L, 1, D)),
        wv=w(keys[6], (L, D, D)), bv=w(keys[7], (L, 1, D)),
        wo=w(keys[8], (L, D, D)), bo=w(keys[9], (L, 1, D)),
        ln1_w=jnp.ones((L, 1, D), jnp.float32),
        ln1_b=jnp.zeros((L, 1, D), jnp.float32),
        ff1_w=w(keys[10], (L, D, F)), ff1_b=w(keys[11], (L, 1, F)),
        ff2_w=w(keys[12], (L, F, D)), ff2_b=w(keys[13], (L, 1, D)),
        ln2_w=jnp.ones((L, 1, D), jnp.float32),
        ln2_b=jnp.zeros((L, 1, D), jnp.float32),
        fc_w=w(keys[14], (D, C)), fc_b=w(keys[15], (1, C)),
    )


def reference_forward(x, p):
    """Pure-JAX f32 reference with the PyTorch module's math (for verification)."""
    B, S, _ = x.shape
    D, H = D_MODEL, NHEAD
    hd = D // H
    h = jnp.einsum('bsi,id->bsd', x, p['emb_w']) + p['emb_b'][0]
    for l in range(NUM_LAYERS):
        q = h @ p['wq'][l] + p['bq'][l][0]
        k = h @ p['wk'][l] + p['bk'][l][0]
        v = h @ p['wv'][l] + p['bv'][l][0]
        qh = q.reshape(B, S, H, hd).transpose(0, 2, 1, 3)
        kh = k.reshape(B, S, H, hd).transpose(0, 2, 1, 3)
        vh = v.reshape(B, S, H, hd).transpose(0, 2, 1, 3)
        s = jnp.einsum('bhqd,bhkd->bhqk', qh, kh) / jnp.sqrt(hd)
        a = jax.nn.softmax(s, axis=-1)
        o = jnp.einsum('bhqk,bhkd->bhqd', a, vh).transpose(0, 2, 1, 3).reshape(B, S, D)
        attn = o @ p['wo'][l] + p['bo'][l][0]
        h = _layer_norm(h + attn, p['ln1_w'][l][0], p['ln1_b'][l][0])
        ff = jax.nn.relu(h @ p['ff1_w'][l] + p['ff1_b'][l][0]) @ p['ff2_w'][l] + p['ff2_b'][l][0]
        h = _layer_norm(h + ff, p['ln2_w'][l][0], p['ln2_b'][l][0])
    pooled = h.mean(axis=1)
    return pooled @ p['fc_w'] + p['fc_b'][0]


if __name__ == "__main__":
    key = jax.random.PRNGKey(0)
    pkey, xkey = jax.random.split(key)
    params = init_params(pkey)

    B, S = 2, 8
    x = jax.random.normal(xkey, (B, S, INPUT_SIZE), dtype=jnp.float32)

    out = jax.block_until_ready(transformer_forward(x, params))
    ref = jax.block_until_ready(reference_forward(x, params))

    assert out.shape == (B, NUM_CLASSES)
    # Kernel uses bf16 MXU operands with f32 accumulation (expected abs error
    # ~1e-3 vs the pure-f32 reference); tolerance sized accordingly.
    assert jnp.allclose(out, ref, rtol=2e-2, atol=2e-2), (out, ref)

    print("KERNEL_OK")
</pallas_src>

<mosaic_0001>
module attributes {stable_mosaic.version = 11 : i64} {
  func.func @transformer_kernel(%arg0: i32, %arg1: memref<1x8x32xbf16, #tpu.memory_space<vmem>>, %arg2: memref<128x8xbf16, #tpu.memory_space<vmem>>, %arg3: memref<8x128xbf16, #tpu.memory_space<vmem>>, %arg4: memref<32x128xbf16, #tpu.memory_space<vmem>>, %arg5: memref<1x128xf32, #tpu.memory_space<vmem>>, %arg6: memref<2x128x384xbf16, #tpu.memory_space<vmem>>, %arg7: memref<2x1x384xf32, #tpu.memory_space<vmem>>, %arg8: memref<2x128x128xbf16, #tpu.memory_space<vmem>>, %arg9: memref<2x6x128xf32, #tpu.memory_space<vmem>>, %arg10: memref<2x128x256xbf16, #tpu.memory_space<vmem>>, %arg11: memref<2x1x256xf32, #tpu.memory_space<vmem>>, %arg12: memref<2x256x128xbf16, #tpu.memory_space<vmem>>, %arg13: memref<1x1x128xf32, #tpu.memory_space<vmem>>, %arg14: memref<8x128xf32, #tpu.memory_space<vmem>>) attributes {dimension_semantics = [#tpu.dimension_semantics<parallel>], iteration_bounds = array<i64: 2>, scalar_prefetch = 0 : i64, scratch_operands = 1 : i64, tpu.core_type = #tpu.core_type<tc>, window_params = [{transform_indices = @transform_0, window_bounds = array<i64: 1, 8, 32>}, {pipeline_mode = #tpu.pipeline_mode<synchronous>, transform_indices = @transform_1, window_bounds = array<i64: 128, 8>}, {pipeline_mode = #tpu.pipeline_mode<synchronous>, transform_indices = @transform_2, window_bounds = array<i64: 8, 128>}, {pipeline_mode = #tpu.pipeline_mode<synchronous>, transform_indices = @transform_3, window_bounds = array<i64: 32, 128>}, {pipeline_mode = #tpu.pipeline_mode<synchronous>, transform_indices = @transform_4, window_bounds = array<i64: 1, 128>}, {pipeline_mode = #tpu.pipeline_mode<synchronous>, transform_indices = @transform_5, window_bounds = array<i64: 2, 128, 384>}, {pipeline_mode = #tpu.pipeline_mode<synchronous>, transform_indices = @transform_6, window_bounds = array<i64: 2, 1, 384>}, {pipeline_mode = #tpu.pipeline_mode<synchronous>, transform_indices = @transform_7, window_bounds = array<i64: 2, 128, 128>}, {pipeline_mode = #tpu.pipeline_mode<synchronous>, transform_indices = @transform_8, window_bounds = array<i64: 2, 6, 128>}, {pipeline_mode = #tpu.pipeline_mode<synchronous>, transform_indices = @transform_9, window_bounds = array<i64: 2, 128, 256>}, {pipeline_mode = #tpu.pipeline_mode<synchronous>, transform_indices = @transform_10, window_bounds = array<i64: 2, 1, 256>}, {pipeline_mode = #tpu.pipeline_mode<synchronous>, transform_indices = @transform_11, window_bounds = array<i64: 2, 256, 128>}, {transform_indices = @transform_12, window_bounds = array<i64: 1, 1, 128>}]} {
    %c0 = arith.constant 0 : index
    %c0_0 = arith.constant 0 : index
    %0 = vector.load %arg2[%c0, %c0_0] : memref<128x8xbf16, #tpu.memory_space<vmem>>, vector<128x8xbf16>
    %c0_1 = arith.constant 0 : index
    %c0_2 = arith.constant 0 : index
    %1 = vector.load %arg3[%c0_1, %c0_2] : memref<8x128xbf16, #tpu.memory_space<vmem>>, vector<8x128xbf16>
    %c0_3 = arith.constant 0 : index
    %c0_4 = arith.constant 0 : index
    %c0_5 = arith.constant 0 : index
    %2 = vector.load %arg1[%c0_3, %c0_4, %c0_5] : memref<1x8x32xbf16, #tpu.memory_space<vmem>>, vector<1x8x32xbf16>
    %3 = vector.shape_cast %2 : vector<1x8x32xbf16> to vector<8x32xbf16>
    %c0_6 = arith.constant 0 : index
    %c0_7 = arith.constant 0 : index
    %4 = vector.load %arg4[%c0_6, %c0_7] : memref<32x128xbf16, #tpu.memory_space<vmem>>, vector<32x128xbf16>
    %cst = arith.constant dense<0.000000e+00> : vector<8x128xf32>
    %5 = tpu.matmul %3, %4, %cst {dimension_numbers = #tpu.dot_dimension_numbers<[1], [0], [0], [1], [0, 0, 1, 1], [], []>} : vector<8x32xbf16>, vector<32x128xbf16>, vector<8x128xf32> -> vector<8x128xf32>
    %c0_8 = arith.constant 0 : index
    %c0_9 = arith.constant 0 : index
    %6 = vector.load %arg5[%c0_8, %c0_9] : memref<1x128xf32, #tpu.memory_space<vmem>>, vector<1x128xf32>
    %7 = vector.broadcast %6 : vector<1x128xf32> to vector<8x128xf32>
    %8 = arith.addf %5, %7 : vector<8x128xf32>
    %c0_10 = arith.constant 0 : index
    %c0_11 = arith.constant 0 : index
    %c0_12 = arith.constant 0 : index
    %9 = vector.load %arg9[%c0_10, %c0_11, %c0_12] : memref<2x6x128xf32, #tpu.memory_space<vmem>>, vector<1x6x128xf32>
    %10 = vector.shape_cast %9 : vector<1x6x128xf32> to vector<6x128xf32>
    %11 = arith.truncf %8 : vector<8x128xf32> to vector<8x128xbf16>
    %c0_13 = arith.constant 0 : index
    %c0_14 = arith.constant 0 : index
    %c0_15 = arith.constant 0 : index
    %12 = vector.load %arg6[%c0_13, %c0_14, %c0_15] : memref<2x128x384xbf16, #tpu.memory_space<vmem>>, vector<1x128x384xbf16>
    %13 = vector.shape_cast %12 : vector<1x128x384xbf16> to vector<128x384xbf16>
    %cst_16 = arith.constant dense<0.000000e+00> : vector<8x384xf32>
    %14 = tpu.matmul %11, %13, %cst_16 {dimension_numbers = #tpu.dot_dimension_numbers<[1], [0], [0], [1], [0, 0, 1, 1], [], []>} : vector<8x128xbf16>, vector<128x384xbf16>, vector<8x384xf32> -> vector<8x384xf32>
    %c0_17 = arith.constant 0 : index
    %c0_18 = arith.constant 0 : index
    %c0_19 = arith.constant 0 : index
    %15 = vector.load %arg7[%c0_17, %c0_18, %c0_19] : memref<2x1x384xf32, #tpu.memory_space<vmem>>, vector<1x1x384xf32>
    %16 = vector.shape_cast %15 : vector<1x1x384xf32> to vector<1x384xf32>
    %17 = vector.broadcast %16 : vector<1x384xf32> to vector<8x384xf32>
    %18 = arith.addf %14, %17 : vector<8x384xf32>
    %19 = vector.extract_strided_slice %18 {offsets = [0, 0], sizes = [8, 128], strides = [1, 1]} : vector<8x384xf32> to vector<8x128xf32>
    %20 = vector.extract_strided_slice %18 {offsets = [0, 128], sizes = [8, 128], strides = [1, 1]} : vector<8x384xf32> to vector<8x128xf32>
    %21 = vector.extract_strided_slice %18 {offsets = [0, 256], sizes = [8, 128], strides = [1, 1]} : vector<8x384xf32> to vector<8x128xf32>
    %22 = vector.shape_cast %19 : vector<8x128xf32> to vector<8x1x128xf32>
    %23 = vector.shape_cast %20 : vector<8x128xf32> to vector<1x8x128xf32>
    %24 = vector.broadcast %22 : vector<8x1x128xf32> to vector<8x8x128xf32>
    %25 = vector.broadcast %23 : vector<1x8x128xf32> to vector<8x8x128xf32>
    %26 = arith.mulf %24, %25 : vector<8x8x128xf32>
    %27 = vector.shape_cast %26 : vector<8x8x128xf32> to vector<64x128xf32>
    %28 = arith.truncf %27 : vector<64x128xf32> to vector<64x128xbf16>
    %cst_20 = arith.constant dense<0.000000e+00> : vector<64x8xf32>
    %29 = tpu.matmul %28, %0, %cst_20 {dimension_numbers = #tpu.dot_dimension_numbers<[1], [0], [0], [1], [0, 0, 1, 1], [], []>} : vector<64x128xbf16>, vector<128x8xbf16>, vector<64x8xf32> -> vector<64x8xf32>
    %30 = vector.shape_cast %29 : vector<64x8xf32> to vector<8x8x8xf32>
    %cst_21 = arith.constant dense<0xFF800000> : vector<8x8xf32>
    %31 = vector.multi_reduction <maximumf>, %30, %cst_21 [1] : vector<8x8x8xf32> to vector<8x8xf32>
    %32 = vector.shape_cast %31 : vector<8x8xf32> to vector<8x1x8xf32>
    %33 = vector.broadcast %32 : vector<8x1x8xf32> to vector<8x8x8xf32>
    %34 = arith.subf %30, %33 : vector<8x8x8xf32>
    %35 = math.exp %34 : vector<8x8x8xf32>
    %cst_22 = arith.constant dense<0.000000e+00> : vector<8x8xf32>
    %36 = vector.multi_reduction <add>, %35, %cst_22 [1] : vector<8x8x8xf32> to vector<8x8xf32>
    %37 = vector.shape_cast %36 : vector<8x8xf32> to vector<8x1x8xf32>
    %38 = tpu.reciprocal %37 {approx = true} : vector<8x1x8xf32> -> vector<8x1x8xf32>
    %39 = vector.broadcast %38 : vector<8x1x8xf32> to vector<8x8x8xf32>
    %40 = arith.mulf %35, %39 : vector<8x8x8xf32>
    %41 = vector.shape_cast %40 : vector<8x8x8xf32> to vector<64x8xf32>
    %42 = arith.truncf %41 : vector<64x8xf32> to vector<64x8xbf16>
    %cst_23 = arith.constant dense<0.000000e+00> : vector<64x128xf32>
    %43 = tpu.matmul %42, %1, %cst_23 {dimension_numbers = #tpu.dot_dimension_numbers<[1], [0], [0], [1], [0, 0, 1, 1], [], []>} : vector<64x8xbf16>, vector<8x128xbf16>, vector<64x128xf32> -> vector<64x128xf32>
    %44 = vector.shape_cast %43 : vector<64x128xf32> to vector<8x8x128xf32>
    %45 = vector.shape_cast %21 : vector<8x128xf32> to vector<1x8x128xf32>
    %46 = vector.broadcast %45 : vector<1x8x128xf32> to vector<8x8x128xf32>
    %47 = arith.mulf %44, %46 : vector<8x8x128xf32>
    %cst_24 = arith.constant dense<0.000000e+00> : vector<8x128xf32>
    %48 = vector.multi_reduction <add>, %47, %cst_24 [1] : vector<8x8x128xf32> to vector<8x128xf32>
    %c0_25 = arith.constant 0 : index
    %c0_26 = arith.constant 0 : index
    %49 = vector.load %arg14[%c0_25, %c0_26] : memref<8x128xf32, #tpu.memory_space<vmem>>, vector<8x128xf32>
    tpu.vector_store %arg14[%c0_25, %c0_26], %48 {strides = array<i32>} : memref<8x128xf32, #tpu.memory_space<vmem>>, vector<8x128xf32>,
    %c0_27 = arith.constant 0 : index
    %c0_28 = arith.constant 0 : index
    %50 = vector.load %arg14[%c0_27, %c0_28] : memref<8x128xf32, #tpu.memory_space<vmem>>, vector<8x128xf32>
    %51 = arith.truncf %50 : vector<8x128xf32> to vector<8x128xbf16>
    %c0_29 = arith.constant 0 : index
    %c0_30 = arith.constant 0 : index
    %c0_31 = arith.constant 0 : index
    %52 = vector.load %arg8[%c0_29, %c0_30, %c0_31] : memref<2x128x128xbf16, #tpu.memory_space<vmem>>, vector<1x128x128xbf16>
    %53 = vector.shape_cast %52 : vector<1x128x128xbf16> to vector<128x128xbf16>
    %cst_32 = arith.constant dense<0.000000e+00> : vector<8x128xf32>
    %54 = tpu.matmul %51, %53, %cst_32 {dimension_numbers = #tpu.dot_dimension_numbers<[1], [0], [0], [1], [0, 0, 1, 1], [], []>} : vector<8x128xbf16>, vector<128x128xbf16>, vector<8x128xf32> -> vector<8x128xf32>
    %55 = vector.extract_strided_slice %10 {offsets = [0, 0], sizes = [1, 128], strides = [1, 1]} : vector<6x128xf32> to vector<1x128xf32>
    %56 = vector.broadcast %55 : vector<1x128xf32> to vector<8x128xf32>
    %57 = arith.addf %54, %56 : vector<8x128xf32>
    %58 = arith.addf %8, %57 : vector<8x128xf32>
    %59 = vector.extract_strided_slice %10 {offsets = [1, 0], sizes = [1, 128], strides = [1, 1]} : vector<6x128xf32> to vector<1x128xf32>
    %60 = vector.extract_strided_slice %10 {offsets = [2, 0], sizes = [1, 128], strides = [1, 1]} : vector<6x128xf32> to vector<1x128xf32>
    %cst_33 = arith.constant dense<0.000000e+00> : vector<8xf32>
    %61 = vector.multi_reduction <add>, %58, %cst_33 [1] : vector<8x128xf32> to vector<8xf32>
    %62 = vector.shape_cast %61 : vector<8xf32> to vector<8x1xf32>
    %cst_34 = arith.constant 1.280000e+02 : f32
    %63 = vector.broadcast %cst_34 : f32 to vector<8x1xf32>
    %64 = arith.divf %62, %63 : vector<8x1xf32>
    %65 = vector.broadcast %64 : vector<8x1xf32> to vector<8x128xf32>
    %66 = arith.subf %58, %65 : vector<8x128xf32>
    %67 = arith.mulf %66, %66 : vector<8x128xf32>
    %cst_35 = arith.constant dense<0.000000e+00> : vector<8xf32>
    %68 = vector.multi_reduction <add>, %67, %cst_35 [1] : vector<8x128xf32> to vector<8xf32>
    %69 = vector.shape_cast %68 : vector<8xf32> to vector<8x1xf32>
    %cst_36 = arith.constant 1.280000e+02 : f32
    %70 = vector.broadcast %cst_36 : f32 to vector<8x1xf32>
    %71 = arith.divf %69, %70 : vector<8x1xf32>
    %72 = vector.broadcast %64 : vector<8x1xf32> to vector<8x128xf32>
    %73 = arith.subf %58, %72 : vector<8x128xf32>
    %cst_37 = arith.constant 9.99999974E-6 : f32
    %74 = vector.broadcast %cst_37 : f32 to vector<8x1xf32>
    %75 = arith.addf %71, %74 : vector<8x1xf32>
    %76 = math.rsqrt %75 : vector<8x1xf32>
    %77 = vector.broadcast %76 : vector<8x1xf32> to vector<8x128xf32>
    %78 = arith.mulf %73, %77 : vector<8x128xf32>
    %79 = vector.broadcast %59 : vector<1x128xf32> to vector<8x128xf32>
    %80 = arith.mulf %78, %79 : vector<8x128xf32>
    %81 = vector.broadcast %60 : vector<1x128xf32> to vector<8x128xf32>
    %82 = arith.addf %80, %81 : vector<8x128xf32>
    %83 = arith.truncf %82 : vector<8x128xf32> to vector<8x128xbf16>
    %c0_38 = arith.constant 0 : index
    %c0_39 = arith.constant 0 : index
    %c0_40 = arith.constant 0 : index
    %84 = vector.load %arg10[%c0_38, %c0_39, %c0_40] : memref<2x128x256xbf16, #tpu.memory_space<vmem>>, vector<1x128x256xbf16>
    %85 = vector.shape_cast %84 : vector<1x128x256xbf16> to vector<128x256xbf16>
    %cst_41 = arith.constant dense<0.000000e+00> : vector<8x256xf32>
    %86 = tpu.matmul %83, %85, %cst_41 {dimension_numbers = #tpu.dot_dimension_numbers<[1], [0], [0], [1], [0, 0, 1, 1], [], []>} : vector<8x128xbf16>, vector<128x256xbf16>, vector<8x256xf32> -> vector<8x256xf32>
    %c0_42 = arith.constant 0 : index
    %c0_43 = arith.constant 0 : index
    %c0_44 = arith.constant 0 : index
    %87 = vector.load %arg11[%c0_42, %c0_43, %c0_44] : memref<2x1x256xf32, #tpu.memory_space<vmem>>, vector<1x1x256xf32>
    %88 = vector.shape_cast %87 : vector<1x1x256xf32> to vector<1x256xf32>
    %89 = vector.broadcast %88 : vector<1x256xf32> to vector<8x256xf32>
    %90 = arith.addf %86, %89 : vector<8x256xf32>
    %cst_45 = arith.constant 0.000000e+00 : f32
    %91 = vector.broadcast %cst_45 : f32 to vector<8x256xf32>
    %92 = arith.maximumf %90, %91 : vector<8x256xf32>
    %93 = arith.truncf %92 : vector<8x256xf32> to vector<8x256xbf16>
    %c0_46 = arith.constant 0 : index
    %c0_47 = arith.constant 0 : index
    %c0_48 = arith.constant 0 : index
    %94 = vector.load %arg12[%c0_46, %c0_47, %c0_48] : memref<2x256x128xbf16, #tpu.memory_space<vmem>>, vector<1x256x128xbf16>
    %95 = vector.shape_cast %94 : vector<1x256x128xbf16> to vector<256x128xbf16>
    %cst_49 = arith.constant dense<0.000000e+00> : vector<8x128xf32>
    %96 = tpu.matmul %93, %95, %cst_49 {dimension_numbers = #tpu.dot_dimension_numbers<[1], [0], [0], [1], [0, 0, 1, 1], [], []>} : vector<8x256xbf16>, vector<256x128xbf16>, vector<8x128xf32> -> vector<8x128xf32>
    %97 = vector.extract_strided_slice %10 {offsets = [5, 0], sizes = [1, 128], strides = [1, 1]} : vector<6x128xf32> to vector<1x128xf32>
    %98 = vector.broadcast %97 : vector<1x128xf32> to vector<8x128xf32>
    %99 = arith.addf %96, %98 : vector<8x128xf32>
    %100 = arith.addf %82, %99 : vector<8x128xf32>
    %101 = vector.extract_strided_slice %10 {offsets = [3, 0], sizes = [1, 128], strides = [1, 1]} : vector<6x128xf32> to vector<1x128xf32>
    %102 = vector.extract_strided_slice %10 {offsets = [4, 0], sizes = [1, 128], strides = [1, 1]} : vector<6x128xf32> to vector<1x128xf32>
    %cst_50 = arith.constant dense<0.000000e+00> : vector<8xf32>
    %103 = vector.multi_reduction <add>, %100, %cst_50 [1] : vector<8x128xf32> to vector<8xf32>
    %104 = vector.shape_cast %103 : vector<8xf32> to vector<8x1xf32>
    %cst_51 = arith.constant 1.280000e+02 : f32
    %105 = vector.broadcast %cst_51 : f32 to vector<8x1xf32>
    %106 = arith.divf %104, %105 : vector<8x1xf32>
    %107 = vector.broadcast %106 : vector<8x1xf32> to vector<8x128xf32>
    %108 = arith.subf %100, %107 : vector<8x128xf32>
    %109 = arith.mulf %108, %108 : vector<8x128xf32>
    %cst_52 = arith.constant dense<0.000000e+00> : vector<8xf32>
    %110 = vector.multi_reduction <add>, %109, %cst_52 [1] : vector<8x128xf32> to vector<8xf32>
    %111 = vector.shape_cast %110 : vector<8xf32> to vector<8x1xf32>
    %cst_53 = arith.constant 1.280000e+02 : f32
    %112 = vector.broadcast %cst_53 : f32 to vector<8x1xf32>
    %113 = arith.divf %111, %112 : vector<8x1xf32>
    %114 = vector.broadcast %106 : vector<8x1xf32> to vector<8x128xf32>
    %115 = arith.subf %100, %114 : vector<8x128xf32>
    %cst_54 = arith.constant 9.99999974E-6 : f32
    %116 = vector.broadcast %cst_54 : f32 to vector<8x1xf32>
    %117 = arith.addf %113, %116 : vector<8x1xf32>
    %118 = math.rsqrt %117 : vector<8x1xf32>
    %119 = vector.broadcast %118 : vector<8x1xf32> to vector<8x128xf32>
    %120 = arith.mulf %115, %119 : vector<8x128xf32>
    %121 = vector.broadcast %101 : vector<1x128xf32> to vector<8x128xf32>
    %122 = arith.mulf %120, %121 : vector<8x128xf32>
    %123 = vector.broadcast %102 : vector<1x128xf32> to vector<8x128xf32>
    %124 = arith.addf %122, %123 : vector<8x128xf32>
    %c1 = arith.constant 1 : index
    %c0_55 = arith.constant 0 : index
    %c0_56 = arith.constant 0 : index
    %125 = vector.load %arg9[%c1, %c0_55, %c0_56] : memref<2x6x128xf32, #tpu.memory_space<vmem>>, vector<1x6x128xf32>
    %126 = vector.shape_cast %125 : vector<1x6x128xf32> to vector<6x128xf32>
    %127 = arith.truncf %124 : vector<8x128xf32> to vector<8x128xbf16>
    %c1_57 = arith.constant 1 : index
    %c0_58 = arith.constant 0 : index
    %c0_59 = arith.constant 0 : index
    %128 = vector.load %arg6[%c1_57, %c0_58, %c0_59] : memref<2x128x384xbf16, #tpu.memory_space<vmem>>, vector<1x128x384xbf16>
    %129 = vector.shape_cast %128 : vector<1x128x384xbf16> to vector<128x384xbf16>
    %cst_60 = arith.constant dense<0.000000e+00> : vector<8x384xf32>
    %130 = tpu.matmul %127, %129, %cst_60 {dimension_numbers = #tpu.dot_dimension_numbers<[1], [0], [0], [1], [0, 0, 1, 1], [], []>} : vector<8x128xbf16>, vector<128x384xbf16>, vector<8x384xf32> -> vector<8x384xf32>
    %c1_61 = arith.constant 1 : index
    %c0_62 = arith.constant 0 : index
    %c0_63 = arith.constant 0 : index
    %131 = vector.load %arg7[%c1_61, %c0_62, %c0_63] : memref<2x1x384xf32, #tpu.memory_space<vmem>>, vector<1x1x384xf32>
    %132 = vector.shape_cast %131 : vector<1x1x384xf32> to vector<1x384xf32>
    %133 = vector.broadcast %132 : vector<1x384xf32> to vector<8x384xf32>
    %134 = arith.addf %130, %133 : vector<8x384xf32>
    %135 = vector.extract_strided_slice %134 {offsets = [0, 0], sizes = [8, 128], strides = [1, 1]} : vector<8x384xf32> to vector<8x128xf32>
    %136 = vector.extract_strided_slice %134 {offsets = [0, 128], sizes = [8, 128], strides = [1, 1]} : vector<8x384xf32> to vector<8x128xf32>
    %137 = vector.extract_strided_slice %134 {offsets = [0, 256], sizes = [8, 128], strides = [1, 1]} : vector<8x384xf32> to vector<8x128xf32>
    %138 = vector.shape_cast %135 : vector<8x128xf32> to vector<8x1x128xf32>
    %139 = vector.shape_cast %136 : vector<8x128xf32> to vector<1x8x128xf32>
    %140 = vector.broadcast %138 : vector<8x1x128xf32> to vector<8x8x128xf32>
    %141 = vector.broadcast %139 : vector<1x8x128xf32> to vector<8x8x128xf32>
    %142 = arith.mulf %140, %141 : vector<8x8x128xf32>
    %143 = vector.shape_cast %142 : vector<8x8x128xf32> to vector<64x128xf32>
    %144 = arith.truncf %143 : vector<64x128xf32> to vector<64x128xbf16>
    %cst_64 = arith.constant dense<0.000000e+00> : vector<64x8xf32>
    %145 = tpu.matmul %144, %0, %cst_64 {dimension_numbers = #tpu.dot_dimension_numbers<[1], [0], [0], [1], [0, 0, 1, 1], [], []>} : vector<64x128xbf16>, vector<128x8xbf16>, vector<64x8xf32> -> vector<64x8xf32>
    %146 = vector.shape_cast %145 : vector<64x8xf32> to vector<8x8x8xf32>
    %cst_65 = arith.constant dense<0xFF800000> : vector<8x8xf32>
    %147 = vector.multi_reduction <maximumf>, %146, %cst_65 [1] : vector<8x8x8xf32> to vector<8x8xf32>
    %148 = vector.shape_cast %147 : vector<8x8xf32> to vector<8x1x8xf32>
    %149 = vector.broadcast %148 : vector<8x1x8xf32> to vector<8x8x8xf32>
    %150 = arith.subf %146, %149 : vector<8x8x8xf32>
    %151 = math.exp %150 : vector<8x8x8xf32>
    %cst_66 = arith.constant dense<0.000000e+00> : vector<8x8xf32>
    %152 = vector.multi_reduction <add>, %151, %cst_66 [1] : vector<8x8x8xf32> to vector<8x8xf32>
    %153 = vector.shape_cast %152 : vector<8x8xf32> to vector<8x1x8xf32>
    %154 = tpu.reciprocal %153 {approx = true} : vector<8x1x8xf32> -> vector<8x1x8xf32>
    %155 = vector.broadcast %154 : vector<8x1x8xf32> to vector<8x8x8xf32>
    %156 = arith.mulf %151, %155 : vector<8x8x8xf32>
    %157 = vector.shape_cast %156 : vector<8x8x8xf32> to vector<64x8xf32>
    %158 = arith.truncf %157 : vector<64x8xf32> to vector<64x8xbf16>
    %cst_67 = arith.constant dense<0.000000e+00> : vector<64x128xf32>
    %159 = tpu.matmul %158, %1, %cst_67 {dimension_numbers = #tpu.dot_dimension_numbers<[1], [0], [0], [1], [0, 0, 1, 1], [], []>} : vector<64x8xbf16>, vector<8x128xbf16>, vector<64x128xf32> -> vector<64x128xf32>
    %160 = vector.shape_cast %159 : vector<64x128xf32> to vector<8x8x128xf32>
    %161 = vector.shape_cast %137 : vector<8x128xf32> to vector<1x8x128xf32>
    %162 = vector.broadcast %161 : vector<1x8x128xf32> to vector<8x8x128xf32>
    %163 = arith.mulf %160, %162 : vector<8x8x128xf32>
    %cst_68 = arith.constant dense<0.000000e+00> : vector<8x128xf32>
    %164 = vector.multi_reduction <add>, %163, %cst_68 [1] : vector<8x8x128xf32> to vector<8x128xf32>
    %c0_69 = arith.constant 0 : index
    %c0_70 = arith.constant 0 : index
    %165 = vector.load %arg14[%c0_69, %c0_70] : memref<8x128xf32, #tpu.memory_space<vmem>>, vector<8x128xf32>
    tpu.vector_store %arg14[%c0_69, %c0_70], %164 {strides = array<i32>} : memref<8x128xf32, #tpu.memory_space<vmem>>, vector<8x128xf32>,
    %c0_71 = arith.constant 0 : index
    %c0_72 = arith.constant 0 : index
    %166 = vector.load %arg14[%c0_71, %c0_72] : memref<8x128xf32, #tpu.memory_space<vmem>>, vector<8x128xf32>
    %167 = arith.truncf %166 : vector<8x128xf32> to vector<8x128xbf16>
    %c1_73 = arith.constant 1 : index
    %c0_74 = arith.constant 0 : index
    %c0_75 = arith.constant 0 : index
    %168 = vector.load %arg8[%c1_73, %c0_74, %c0_75] : memref<2x128x128xbf16, #tpu.memory_space<vmem>>, vector<1x128x128xbf16>
    %169 = vector.shape_cast %168 : vector<1x128x128xbf16> to vector<128x128xbf16>
    %cst_76 = arith.constant dense<0.000000e+00> : vector<8x128xf32>
    %170 = tpu.matmul %167, %169, %cst_76 {dimension_numbers = #tpu.dot_dimension_numbers<[1], [0], [0], [1], [0, 0, 1, 1], [], []>} : vector<8x128xbf16>, vector<128x128xbf16>, vector<8x128xf32> -> vector<8x128xf32>
    %171 = vector.extract_strided_slice %126 {offsets = [0, 0], sizes = [1, 128], strides = [1, 1]} : vector<6x128xf32> to vector<1x128xf32>
    %172 = vector.broadcast %171 : vector<1x128xf32> to vector<8x128xf32>
    %173 = arith.addf %170, %172 : vector<8x128xf32>
    %174 = arith.addf %124, %173 : vector<8x128xf32>
    %175 = vector.extract_strided_slice %126 {offsets = [1, 0], sizes = [1, 128], strides = [1, 1]} : vector<6x128xf32> to vector<1x128xf32>
    %176 = vector.extract_strided_slice %126 {offsets = [2, 0], sizes = [1, 128], strides = [1, 1]} : vector<6x128xf32> to vector<1x128xf32>
    %cst_77 = arith.constant dense<0.000000e+00> : vector<8xf32>
    %177 = vector.multi_reduction <add>, %174, %cst_77 [1] : vector<8x128xf32> to vector<8xf32>
    %178 = vector.shape_cast %177 : vector<8xf32> to vector<8x1xf32>
    %cst_78 = arith.constant 1.280000e+02 : f32
    %179 = vector.broadcast %cst_78 : f32 to vector<8x1xf32>
    %180 = arith.divf %178, %179 : vector<8x1xf32>
    %181 = vector.broadcast %180 : vector<8x1xf32> to vector<8x128xf32>
    %182 = arith.subf %174, %181 : vector<8x128xf32>
    %183 = arith.mulf %182, %182 : vector<8x128xf32>
    %cst_79 = arith.constant dense<0.000000e+00> : vector<8xf32>
    %184 = vector.multi_reduction <add>, %183, %cst_79 [1] : vector<8x128xf32> to vector<8xf32>
    %185 = vector.shape_cast %184 : vector<8xf32> to vector<8x1xf32>
    %cst_80 = arith.constant 1.280000e+02 : f32
    %186 = vector.broadcast %cst_80 : f32 to vector<8x1xf32>
    %187 = arith.divf %185, %186 : vector<8x1xf32>
    %188 = vector.broadcast %180 : vector<8x1xf32> to vector<8x128xf32>
    %189 = arith.subf %174, %188 : vector<8x128xf32>
    %cst_81 = arith.constant 9.99999974E-6 : f32
    %190 = vector.broadcast %cst_81 : f32 to vector<8x1xf32>
    %191 = arith.addf %187, %190 : vector<8x1xf32>
    %192 = math.rsqrt %191 : vector<8x1xf32>
    %193 = vector.broadcast %192 : vector<8x1xf32> to vector<8x128xf32>
    %194 = arith.mulf %189, %193 : vector<8x128xf32>
    %195 = vector.broadcast %175 : vector<1x128xf32> to vector<8x128xf32>
    %196 = arith.mulf %194, %195 : vector<8x128xf32>
    %197 = vector.broadcast %176 : vector<1x128xf32> to vector<8x128xf32>
    %198 = arith.addf %196, %197 : vector<8x128xf32>
    %199 = arith.truncf %198 : vector<8x128xf32> to vector<8x128xbf16>
    %c1_82 = arith.constant 1 : index
    %c0_83 = arith.constant 0 : index
    %c0_84 = arith.constant 0 : index
    %200 = vector.load %arg10[%c1_82, %c0_83, %c0_84] : memref<2x128x256xbf16, #tpu.memory_space<vmem>>, vector<1x128x256xbf16>
    %201 = vector.shape_cast %200 : vector<1x128x256xbf16> to vector<128x256xbf16>
    %cst_85 = arith.constant dense<0.000000e+00> : vector<8x256xf32>
    %202 = tpu.matmul %199, %201, %cst_85 {dimension_numbers = #tpu.dot_dimension_numbers<[1], [0], [0], [1], [0, 0, 1, 1], [], []>} : vector<8x128xbf16>, vector<128x256xbf16>, vector<8x256xf32> -> vector<8x256xf32>
    %c1_86 = arith.constant 1 : index
    %c0_87 = arith.constant 0 : index
    %c0_88 = arith.constant 0 : index
    %203 = vector.load %arg11[%c1_86, %c0_87, %c0_88] : memref<2x1x256xf32, #tpu.memory_space<vmem>>, vector<1x1x256xf32>
    %204 = vector.shape_cast %203 : vector<1x1x256xf32> to vector<1x256xf32>
    %205 = vector.broadcast %204 : vector<1x256xf32> to vector<8x256xf32>
    %206 = arith.addf %202, %205 : vector<8x256xf32>
    %cst_89 = arith.constant 0.000000e+00 : f32
    %207 = vector.broadcast %cst_89 : f32 to vector<8x256xf32>
    %208 = arith.maximumf %206, %207 : vector<8x256xf32>
    %209 = arith.truncf %208 : vector<8x256xf32> to vector<8x256xbf16>
    %c1_90 = arith.constant 1 : index
    %c0_91 = arith.constant 0 : index
    %c0_92 = arith.constant 0 : index
    %210 = vector.load %arg12[%c1_90, %c0_91, %c0_92] : memref<2x256x128xbf16, #tpu.memory_space<vmem>>, vector<1x256x128xbf16>
    %211 = vector.shape_cast %210 : vector<1x256x128xbf16> to vector<256x128xbf16>
    %cst_93 = arith.constant dense<0.000000e+00> : vector<8x128xf32>
    %212 = tpu.matmul %209, %211, %cst_93 {dimension_numbers = #tpu.dot_dimension_numbers<[1], [0], [0], [1], [0, 0, 1, 1], [], []>} : vector<8x256xbf16>, vector<256x128xbf16>, vector<8x128xf32> -> vector<8x128xf32>
    %213 = vector.extract_strided_slice %126 {offsets = [5, 0], sizes = [1, 128], strides = [1, 1]} : vector<6x128xf32> to vector<1x128xf32>
    %214 = vector.broadcast %213 : vector<1x128xf32> to vector<8x128xf32>
    %215 = arith.addf %212, %214 : vector<8x128xf32>
    %216 = arith.addf %198, %215 : vector<8x128xf32>
    %217 = vector.extract_strided_slice %126 {offsets = [3, 0], sizes = [1, 128], strides = [1, 1]} : vector<6x128xf32> to vector<1x128xf32>
    %218 = vector.extract_strided_slice %126 {offsets = [4, 0], sizes = [1, 128], strides = [1, 1]} : vector<6x128xf32> to vector<1x128xf32>
    %cst_94 = arith.constant dense<0.000000e+00> : vector<8xf32>
    %219 = vector.multi_reduction <add>, %216, %cst_94 [1] : vector<8x128xf32> to vector<8xf32>
    %220 = vector.shape_cast %219 : vector<8xf32> to vector<8x1xf32>
    %cst_95 = arith.constant 1.280000e+02 : f32
    %221 = vector.broadcast %cst_95 : f32 to vector<8x1xf32>
    %222 = arith.divf %220, %221 : vector<8x1xf32>
    %223 = vector.broadcast %222 : vector<8x1xf32> to vector<8x128xf32>
    %224 = arith.subf %216, %223 : vector<8x128xf32>
    %225 = arith.mulf %224, %224 : vector<8x128xf32>
    %cst_96 = arith.constant dense<0.000000e+00> : vector<8xf32>
    %226 = vector.multi_reduction <add>, %225, %cst_96 [1] : vector<8x128xf32> to vector<8xf32>
    %227 = vector.shape_cast %226 : vector<8xf32> to vector<8x1xf32>
    %cst_97 = arith.constant 1.280000e+02 : f32
    %228 = vector.broadcast %cst_97 : f32 to vector<8x1xf32>
    %229 = arith.divf %227, %228 : vector<8x1xf32>
    %230 = vector.broadcast %222 : vector<8x1xf32> to vector<8x128xf32>
    %231 = arith.subf %216, %230 : vector<8x128xf32>
    %cst_98 = arith.constant 9.99999974E-6 : f32
    %232 = vector.broadcast %cst_98 : f32 to vector<8x1xf32>
    %233 = arith.addf %229, %232 : vector<8x1xf32>
    %234 = math.rsqrt %233 : vector<8x1xf32>
    %235 = vector.broadcast %234 : vector<8x1xf32> to vector<8x128xf32>
    %236 = arith.mulf %231, %235 : vector<8x128xf32>
    %237 = vector.broadcast %217 : vector<1x128xf32> to vector<8x128xf32>
    %238 = arith.mulf %236, %237 : vector<8x128xf32>
    %239 = vector.broadcast %218 : vector<1x128xf32> to vector<8x128xf32>
    %240 = arith.addf %238, %239 : vector<8x128xf32>
    %241 = vector.shape_cast %240 : vector<8x128xf32> to vector<1x8x128xf32>
    %cst_99 = arith.constant dense<0.000000e+00> : vector<1x128xf32>
    %242 = vector.multi_reduction <add>, %241, %cst_99 [1] : vector<1x8x128xf32> to vector<1x128xf32>
    %cst_100 = arith.constant 1.250000e-01 : f32
    %243 = vector.broadcast %cst_100 : f32 to vector<1x128xf32>
    %244 = arith.mulf %242, %243 : vector<1x128xf32>
    %245 = vector.shape_cast %244 : vector<1x128xf32> to vector<1x1x128xf32>
    %c0_101 = arith.constant 0 : index
    %c0_102 = arith.constant 0 : index
    %c0_103 = arith.constant 0 : index
    %246 = vector.load %arg13[%c0_101, %c0_102, %c0_103] : memref<1x1x128xf32, #tpu.memory_space<vmem>>, vector<1x1x128xf32>
    tpu.vector_store %arg13[%c0_101, %c0_102, %c0_103], %245 {strides = array<i32>} : memref<1x1x128xf32, #tpu.memory_space<vmem>>, vector<1x1x128xf32>,
    return
  }
  func.func @transform_0(%arg0: i32) -> (i32, i32, i32) {
    %c0_i32 = arith.constant 0 : i32
    %c0_i32_0 = arith.constant 0 : i32
    %c0_i32_1 = arith.constant 0 : i32
    return %arg0, %c0_i32, %c0_i32_0 : i32, i32, i32
  }
  func.func @transform_1(%arg0: i32) -> (i32, i32) {
    %c0_i32 = arith.constant 0 : i32
    %c0_i32_0 = arith.constant 0 : i32
    %c0_i32_1 = arith.constant 0 : i32
    return %c0_i32, %c0_i32_0 : i32, i32
  }
  func.func @transform_2(%arg0: i32) -> (i32, i32) {
    %c0_i32 = arith.constant 0 : i32
    %c0_i32_0 = arith.constant 0 : i32
    %c0_i32_1 = arith.constant 0 : i32
    return %c0_i32, %c0_i32_0 : i32, i32
  }
  func.func @transform_3(%arg0: i32) -> (i32, i32) {
    %c0_i32 = arith.constant 0 : i32
    %c0_i32_0 = arith.constant 0 : i32
    %c0_i32_1 = arith.constant 0 : i32
    return %c0_i32, %c0_i32_0 : i32, i32
  }
  func.func @transform_4(%arg0: i32) -> (i32, i32) {
    %c0_i32 = arith.constant 0 : i32
    %c0_i32_0 = arith.constant 0 : i32
    %c0_i32_1 = arith.constant 0 : i32
    return %c0_i32, %c0_i32_0 : i32, i32
  }
  func.func @transform_5(%arg0: i32) -> (i32, i32, i32) {
    %c0_i32 = arith.constant 0 : i32
    %c0_i32_0 = arith.constant 0 : i32
    %c0_i32_1 = arith.constant 0 : i32
    %c0_i32_2 = arith.constant 0 : i32
    return %c0_i32, %c0_i32_0, %c0_i32_1 : i32, i32, i32
  }
  func.func @transform_6(%arg0: i32) -> (i32, i32, i32) {
    %c0_i32 = arith.constant 0 : i32
    %c0_i32_0 = arith.constant 0 : i32
    %c0_i32_1 = arith.constant 0 : i32
    %c0_i32_2 = arith.constant 0 : i32
    return %c0_i32, %c0_i32_0, %c0_i32_1 : i32, i32, i32
  }
  func.func @transform_7(%arg0: i32) -> (i32, i32, i32) {
    %c0_i32 = arith.constant 0 : i32
    %c0_i32_0 = arith.constant 0 : i32
    %c0_i32_1 = arith.constant 0 : i32
    %c0_i32_2 = arith.constant 0 : i32
    return %c0_i32, %c0_i32_0, %c0_i32_1 : i32, i32, i32
  }
  func.func @transform_8(%arg0: i32) -> (i32, i32, i32) {
    %c0_i32 = arith.constant 0 : i32
    %c0_i32_0 = arith.constant 0 : i32
    %c0_i32_1 = arith.constant 0 : i32
    %c0_i32_2 = arith.constant 0 : i32
    return %c0_i32, %c0_i32_0, %c0_i32_1 : i32, i32, i32
  }
  func.func @transform_9(%arg0: i32) -> (i32, i32, i32) {
    %c0_i32 = arith.constant 0 : i32
    %c0_i32_0 = arith.constant 0 : i32
    %c0_i32_1 = arith.constant 0 : i32
    %c0_i32_2 = arith.constant 0 : i32
    return %c0_i32, %c0_i32_0, %c0_i32_1 : i32, i32, i32
  }
  func.func @transform_10(%arg0: i32) -> (i32, i32, i32) {
    %c0_i32 = arith.constant 0 : i32
    %c0_i32_0 = arith.constant 0 : i32
    %c0_i32_1 = arith.constant 0 : i32
    %c0_i32_2 = arith.constant 0 : i32
    return %c0_i32, %c0_i32_0, %c0_i32_1 : i32, i32, i32
  }
  func.func @transform_11(%arg0: i32) -> (i32, i32, i32) {
    %c0_i32 = arith.constant 0 : i32
    %c0_i32_0 = arith.constant 0 : i32
    %c0_i32_1 = arith.constant 0 : i32
    %c0_i32_2 = arith.constant 0 : i32
    return %c0_i32, %c0_i32_0, %c0_i32_1 : i32, i32, i32
  }
  func.func @transform_12(%arg0: i32) -> (i32, i32, i32) {
    %c0_i32 = arith.constant 0 : i32
    %c0_i32_0 = arith.constant 0 : i32
    %c0_i32_1 = arith.constant 0 : i32
    return %arg0, %c0_i32, %c0_i32_0 : i32, i32, i32
  }
}

</mosaic_0001>

<llo_original>
// kernel: tpu_custom_call.1
$region0: #{tpu_custom_call.1}
  #allocation0 [shape = 'u32[]', space=smem, size = 0x4, offset = 0x4, fixed_abs, tag = 'smem constant byte address 0x4 - core index']
  #allocation1 [shape = 'u32[72,128]{1,0:T(1,128)}', space=vmem, size = 0x9000, scoped, tag = 'internal scratch']
  #allocation2 [shape = 'f32[8,128]{1,0:T(8,128)}', space=vmem, size = 0x1000, scoped, tag = 'scratch operand']
  %s0 = inlined_call_operand.vmem [shape: bf16[2,8,32], index: 0, kind: input, shape index: {}]
  %s1 = inlined_call_operand.vmem [shape: bf16[128,8], index: 1, kind: input, shape index: {}]
  %s2 = inlined_call_operand.vmem [shape: bf16[8,128], index: 2, kind: input, shape index: {}]
  %s3 = inlined_call_operand.vmem [shape: bf16[32,128], index: 3, kind: input, shape index: {}]
  %s4 = inlined_call_operand.vmem [shape: f32[1,128], index: 4, kind: input, shape index: {}]
  %s5 = inlined_call_operand.hbm [shape: bf16[2,128,384], index: 5, kind: input, shape index: {}]
  %s6 = inlined_call_operand.vmem [shape: f32[2,1,384], index: 6, kind: input, shape index: {}]
  %s7 = inlined_call_operand.hbm [shape: bf16[2,128,128], index: 7, kind: input, shape index: {}]
  %s8 = inlined_call_operand.vmem [shape: f32[2,6,128], index: 8, kind: input, shape index: {}]
  %s9 = inlined_call_operand.hbm [shape: bf16[2,128,256], index: 9, kind: input, shape index: {}]
  %s10 = inlined_call_operand.vmem [shape: f32[2,1,256], index: 10, kind: input, shape index: {}]
  %s11 = inlined_call_operand.hbm [shape: bf16[2,256,128], index: 11, kind: input, shape index: {}]
  %s12 = inlined_call_operand.hbm [shape: f32[2,1,128], index: 12, kind: output, shape index: {}]
  %s13 = sld [smem:[#allocation0]]
  $region97: #{tpu_custom_call.1} parent=0
    _
  %s15 = ssub.s32 1, %s13
  %s16 = scalar_select 0, %s15, %s13
  $region1: #{tpu_custom_call.1} parent=0
    #allocation3 [shape = 'u8[196608]{0}', space=vmem, size = 0x30000, scoped, tag = 'input window, operand 5, single buffered']
    #allocation4 [shape = 's32[2]{0}', space=sflag, size = 0x8, scoped, tag = 'scoped memory for tpu_custom_call.1']
    #allocation5 [shape = 's32[2]{0}', space=sflag, size = 0x8, scoped, tag = 'scoped memory for tpu_custom_call.1']
    #allocation6 [shape = 'u8[65536]{0}', space=vmem, size = 0x10000, scoped, tag = 'input window, operand 7, single buffered']
    #allocation7 [shape = 's32[1]{0}', space=sflag, size = 0x4, scoped, tag = 'scoped memory for tpu_custom_call.1']
    #allocation8 [shape = 'u8[131072]{0}', space=vmem, size = 0x20000, scoped, tag = 'input window, operand 9, single buffered']
    #allocation9 [shape = 'u8[131072]{0}', space=vmem, size = 0x20000, scoped, tag = 'input window, operand 11, single buffered']
    #allocation10 [shape = 's32[1]{0}', space=sflag, size = 0x4, scoped, tag = 'scoped memory for tpu_custom_call.1']
    #allocation11 [shape = 'u8[1024]{0}', space=vmem, size = 0x400, scoped, tag = 'output window, operand 0']
    %17 = vsyncpa [#allocation4], 0
    %18 = vsyncpa [#allocation7], 0
    %19 = vsyncpa [#allocation10], 0
    %20 = vsyncpa [#allocation5], 0
    %s21 = scalar_lea.sflag [#allocation5], 1
    %22 = vsyncpa %s21, 0
    loop: start=0, step=1, limit=4
    $region2: #{tpu_custom_call.1} parent=1 // loop_pre_header
      _
    $region3: #{tpu_custom_call.1} parent=1 // loop_header
      %s24 = sphi 0, %s28
      %p25 = scmp.ge.s32.totalorder %s24, 4
      %s34 = sphi 0, %s36
      %s37 = sphi 0, %s34
      %s38 = sphi 0, %s37
      %s54 = sphi 0, %s38
      %s58 = sphi 0, %s58
      %s60 = sphi 0, %s58
      %s61 = sphi 0, %s60
      %s75 = sphi 0, %s61
      %s79 = sphi 0, %s79
      %s81 = sphi 0, %s79
      %s82 = sphi 0, %s81
      %s96 = sphi 0, %s82
      %s100 = sphi 0, %s100
      %s102 = sphi 0, %s100
      %s103 = sphi 0, %s102
      %s117 = sphi 0, %s103
      %s121 = sphi 0, %s121
      %s123 = sphi 0, %s121
      %s124 = sphi 0, %s123
      %s138 = sphi 0, %s124
      %s142 = sphi 0, %s142
      %s144 = sphi 0, %s142
      %s145 = sphi 0, %s144
      %s159 = sphi 0, %s145
      %s163 = sphi 0, %s163
      %s165 = sphi 0, %s163
      %s166 = sphi 0, %s165
      %s180 = sphi 0, %s166
      %s184 = sphi 0, %s184
      %s186 = sphi 0, %s184
      %s187 = sphi 0, %s186
      %s201 = sphi 0, %s187
      %s205 = sphi 0, %s205
      %s207 = sphi 0, %s205
      %s208 = sphi 0, %s207
      %s222 = sphi 0, %s208
      %s226 = sphi 0, %s226
      %s228 = sphi 0, %s226
      %s229 = sphi 0, %s228
      %s243 = sphi 0, %s229
      %s247 = sphi 0, %s247
      %s249 = sphi 0, %s247
      %s250 = sphi 0, %s249
      %s264 = sphi 0, %s250
      %s268 = sphi 0, %s268
      %s270 = sphi 0, %s268
      %s271 = sphi 0, %s270
      %s285 = sphi 0, %s271
      %s291 = sphi 0, %s293
      %s294 = sphi 0, %s291
      %s295 = sphi 0, %s294
      %s311 = sphi 0, %s295
    $region4: #{tpu_custom_call.1} parent=1 // loop_header_branch
      %27 = sbr.rel (%p25) target = $region8
    $region5: #{tpu_custom_call.1} parent=1 // loop_body
      %s29 = ssub.s32 %s24, 1
      %s30 = ssub.s32 %s24, 2
      %s31 = sadd.s32 %s24, 1
      %s32 = ssub.s32 %s24, %s31
      %p33 = scmp.eq.s32.totalorder %s32, 0
      %s35 = sadd.s32 %s34, 1
      %s36 = scalar_select %p33, %s34, %s35
      %p39 = pneg %p33
      %p40 = scmp.eq.s32.totalorder %s24, 1
      %p41 = por %p39, %p40
      %p42 = scmp.ne.s32.totalorder %s34, %s37
      %p43 = scmp.eq.s32.totalorder %s24, 0
      %p44 = por %p42, %p43
      %p45 = scmp.ne.s32.totalorder %s34, %s37
      %p46 = scmp.eq.s32.totalorder %s29, 1
      %p47 = por %p45, %p46
      %p48 = scmp.ne.s32.totalorder %s37, %s38
      %p49 = scmp.eq.s32.totalorder %s29, 0
      %p50 = por %p48, %p49
      %p51 = scmp.ne.s32.totalorder %s37, %s38
      %p52 = scmp.eq.s32.totalorder %s30, 1
      %p53 = por %p51, %p52
      %p55 = scmp.ne.s32.totalorder %s38, %s54
      %p56 = scmp.eq.s32.totalorder %s30, 0
      %p57 = por %p55, %p56
      %s59 = sadd.s32 %s58, 1
      %p62 = scmp.eq.s32.totalorder %s24, 1
      %p63 = scmp.ne.s32.totalorder %s58, %s60
      %p64 = scmp.eq.s32.totalorder %s24, 0
      %p65 = por %p63, %p64
      %p66 = scmp.ne.s32.totalorder %s58, %s60
      %p67 = scmp.eq.s32.totalorder %s29, 1
      %p68 = por %p66, %p67
      %p69 = scmp.ne.s32.totalorder %s60, %s61
      %p70 = scmp.eq.s32.totalorder %s29, 0
      %p71 = por %p69, %p70
      %p72 = scmp.ne.s32.totalorder %s60, %s61
      %p73 = scmp.eq.s32.totalorder %s30, 1
      %p74 = por %p72, %p73
      %p76 = scmp.ne.s32.totalorder %s61, %s75
      %p77 = scmp.eq.s32.totalorder %s30, 0
      %p78 = por %p76, %p77
      %s80 = sadd.s32 %s79, 1
      %p83 = scmp.eq.s32.totalorder %s24, 1
      %p84 = scmp.ne.s32.totalorder %s79, %s81
      %p85 = scmp.eq.s32.totalorder %s24, 0
      %p86 = por %p84, %p85
      %p87 = scmp.ne.s32.totalorder %s79, %s81
      %p88 = scmp.eq.s32.totalorder %s29, 1
      %p89 = por %p87, %p88
      %p90 = scmp.ne.s32.totalorder %s81, %s82
      %p91 = scmp.eq.s32.totalorder %s29, 0
      %p92 = por %p90, %p91
      %p93 = scmp.ne.s32.totalorder %s81, %s82
      %p94 = scmp.eq.s32.totalorder %s30, 1
      %p95 = por %p93, %p94
      %p97 = scmp.ne.s32.totalorder %s82, %s96
      %p98 = scmp.eq.s32.totalorder %s30, 0
      %p99 = por %p97, %p98
      %s101 = sadd.s32 %s100, 1
      %p104 = scmp.eq.s32.totalorder %s24, 1
      %p105 = scmp.ne.s32.totalorder %s100, %s102
      %p106 = scmp.eq.s32.totalorder %s24, 0
      %p107 = por %p105, %p106
      %p108 = scmp.ne.s32.totalorder %s100, %s102
      %p109 = scmp.eq.s32.totalorder %s29, 1
      %p110 = por %p108, %p109
      %p111 = scmp.ne.s32.totalorder %s102, %s103
      %p112 = scmp.eq.s32.totalorder %s29, 0
      %p113 = por %p111, %p112
      %p114 = scmp.ne.s32.totalorder %s102, %s103
      %p115 = scmp.eq.s32.totalorder %s30, 1
      %p116 = por %p114, %p115
      %p118 = scmp.ne.s32.totalorder %s103, %s117
      %p119 = scmp.eq.s32.totalorder %s30, 0
      %p120 = por %p118, %p119
      %s122 = sadd.s32 %s121, 1
      %p125 = scmp.eq.s32.totalorder %s24, 1
      %p126 = scmp.ne.s32.totalorder %s121, %s123
      %p127 = scmp.eq.s32.totalorder %s24, 0
      %p128 = por %p126, %p127
      %p129 = scmp.ne.s32.totalorder %s121, %s123
      %p130 = scmp.eq.s32.totalorder %s29, 1
      %p131 = por %p129, %p130
      %p132 = scmp.ne.s32.totalorder %s123, %s124
      %p133 = scmp.eq.s32.totalorder %s29, 0
      %p134 = por %p132, %p133
      %p135 = scmp.ne.s32.totalorder %s123, %s124
      %p136 = scmp.eq.s32.totalorder %s30, 1
      %p137 = por %p135, %p136
      %p139 = scmp.ne.s32.totalorder %s124, %s138
      %p140 = scmp.eq.s32.totalorder %s30, 0
      %p141 = por %p139, %p140
      %s143 = sadd.s32 %s142, 1
      %p146 = scmp.eq.s32.totalorder %s24, 1
      %p147 = scmp.ne.s32.totalorder %s142, %s144
      %p148 = scmp.eq.s32.totalorder %s24, 0
      %p149 = por %p147, %p148
      %p150 = scmp.ne.s32.totalorder %s142, %s144
      %p151 = scmp.eq.s32.totalorder %s29, 1
      %p152 = por %p150, %p151
      %p153 = scmp.ne.s32.totalorder %s144, %s145
      %p154 = scmp.eq.s32.totalorder %s29, 0
      %p155 = por %p153, %p154
      %p156 = scmp.ne.s32.totalorder %s144, %s145
      %p157 = scmp.eq.s32.totalorder %s30, 1
      %p158 = por %p156, %p157
      %p160 = scmp.ne.s32.totalorder %s145, %s159
      %p161 = scmp.eq.s32.totalorder %s30, 0
      %p162 = por %p160, %p161
      %s164 = sadd.s32 %s163, 1
      %p167 = scmp.eq.s32.totalorder %s24, 1
      %p168 = scmp.ne.s32.totalorder %s163, %s165
      %p169 = scmp.eq.s32.totalorder %s24, 0
      %p170 = por %p168, %p169
      %p171 = scmp.ne.s32.totalorder %s163, %s165
      %p172 = scmp.eq.s32.totalorder %s29, 1
      %p173 = por %p171, %p172
      %p174 = scmp.ne.s32.totalorder %s165, %s166
      %p175 = scmp.eq.s32.totalorder %s29, 0
      %p176 = por %p174, %p175
      %p177 = scmp.ne.s32.totalorder %s165, %s166
      %p178 = scmp.eq.s32.totalorder %s30, 1
      %p179 = por %p177, %p178
      %p181 = scmp.ne.s32.totalorder %s166, %s180
      %p182 = scmp.eq.s32.totalorder %s30, 0
      %p183 = por %p181, %p182
      %s185 = sadd.s32 %s184, 1
      %p188 = scmp.eq.s32.totalorder %s24, 1
      %p189 = scmp.ne.s32.totalorder %s184, %s186
      %p190 = scmp.eq.s32.totalorder %s24, 0
      %p191 = por %p189, %p190
      %p192 = scmp.ne.s32.totalorder %s184, %s186
      %p193 = scmp.eq.s32.totalorder %s29, 1
      %p194 = por %p192, %p193
      %p195 = scmp.ne.s32.totalorder %s186, %s187
      %p196 = scmp.eq.s32.totalorder %s29, 0
      %p197 = por %p195, %p196
      %p198 = scmp.ne.s32.totalorder %s186, %s187
      %p199 = scmp.eq.s32.totalorder %s30, 1
      %p200 = por %p198, %p199
      %p202 = scmp.ne.s32.totalorder %s187, %s201
      %p203 = scmp.eq.s32.totalorder %s30, 0
      %p204 = por %p202, %p203
      %s206 = sadd.s32 %s205, 1
      %p209 = scmp.eq.s32.totalorder %s24, 1
      %p210 = scmp.ne.s32.totalorder %s205, %s207
      %p211 = scmp.eq.s32.totalorder %s24, 0
      %p212 = por %p210, %p211
      %p213 = scmp.ne.s32.totalorder %s205, %s207
      %p214 = scmp.eq.s32.totalorder %s29, 1
      %p215 = por %p213, %p214
      %p216 = scmp.ne.s32.totalorder %s207, %s208
      %p217 = scmp.eq.s32.totalorder %s29, 0
      %p218 = por %p216, %p217
      %p219 = scmp.ne.s32.totalorder %s207, %s208
      %p220 = scmp.eq.s32.totalorder %s30, 1
      %p221 = por %p219, %p220
      %p223 = scmp.ne.s32.totalorder %s208, %s222
      %p224 = scmp.eq.s32.totalorder %s30, 0
      %p225 = por %p223, %p224
      %s227 = sadd.s32 %s226, 1
      %p230 = scmp.eq.s32.totalorder %s24, 1
      %p231 = scmp.ne.s32.totalorder %s226, %s228
      %p232 = scmp.eq.s32.totalorder %s24, 0
      %p233 = por %p231, %p232
      %p234 = scmp.ne.s32.totalorder %s226, %s228
      %p235 = scmp.eq.s32.totalorder %s29, 1
      %p236 = por %p234, %p235
      %p237 = scmp.ne.s32.totalorder %s228, %s229
      %p238 = scmp.eq.s32.totalorder %s29, 0
      %p239 = por %p237, %p238
      %p240 = scmp.ne.s32.totalorder %s228, %s229
      %p241 = scmp.eq.s32.totalorder %s30, 1
      %p242 = por %p240, %p241
      %p244 = scmp.ne.s32.totalorder %s229, %s243
      %p245 = scmp.eq.s32.totalorder %s30, 0
      %p246 = por %p244, %p245
      %s248 = sadd.s32 %s247, 1
      %p251 = scmp.eq.s32.totalorder %s24, 1
      %p252 = scmp.ne.s32.totalorder %s247, %s249
      %p253 = scmp.eq.s32.totalorder %s24, 0
      %p254 = por %p252, %p253
      %p255 = scmp.ne.s32.totalorder %s247, %s249
      %p256 = scmp.eq.s32.totalorder %s29, 1
      %p257 = por %p255, %p256
      %p258 = scmp.ne.s32.totalorder %s249, %s250
      %p259 = scmp.eq.s32.totalorder %s29, 0
      %p260 = por %p258, %p259
      %p261 = scmp.ne.s32.totalorder %s249, %s250
      %p262 = scmp.eq.s32.totalorder %s30, 1
      %p263 = por %p261, %p262
      %p265 = scmp.ne.s32.totalorder %s250, %s264
      %p266 = scmp.eq.s32.totalorder %s30, 0
      %p267 = por %p265, %p266
      %s269 = sadd.s32 %s268, 1
      %p272 = scmp.eq.s32.totalorder %s24, 1
      %p273 = scmp.ne.s32.totalorder %s268, %s270
      %p274 = scmp.eq.s32.totalorder %s24, 0
      %p275 = por %p273, %p274
      %p276 = scmp.ne.s32.totalorder %s268, %s270
      %p277 = scmp.eq.s32.totalorder %s29, 1
      %p278 = por %p276, %p277
      %p279 = scmp.ne.s32.totalorder %s270, %s271
      %p280 = scmp.eq.s32.totalorder %s29, 0
      %p281 = por %p279, %p280
      %p282 = scmp.ne.s32.totalorder %s270, %s271
      %p283 = scmp.eq.s32.totalorder %s30, 1
      %p284 = por %p282, %p283
      %p286 = scmp.ne.s32.totalorder %s271, %s285
      %p287 = scmp.eq.s32.totalorder %s30, 0
      %p288 = por %p286, %p287
      %s289 = ssub.s32 %s24, %s31
      %p290 = scmp.eq.s32.totalorder %s289, 0
      %s292 = sadd.s32 %s291, 1
      %s293 = scalar_select %p290, %s291, %s292
      %p296 = pneg %p290
      %p297 = scmp.eq.s32.totalorder %s24, 1
      %p298 = por %p296, %p297
      %p299 = scmp.ne.s32.totalorder %s291, %s294
      %p300 = scmp.eq.s32.totalorder %s24, 0
      %p301 = por %p299, %p300
      %p302 = scmp.ne.s32.totalorder %s291, %s294
      %p303 = scmp.eq.s32.totalorder %s29, 1
      %p304 = por %p302, %p303
      %p305 = scmp.ne.s32.totalorder %s294, %s295
      %p306 = scmp.eq.s32.totalorder %s29, 0
      %p307 = por %p305, %p306
      %p308 = scmp.ne.s32.totalorder %s294, %s295
      %p309 = scmp.eq.s32.totalorder %s30, 1
      %p310 = por %p308, %p309
      %p312 = scmp.ne.s32.totalorder %s295, %s311
      %p313 = scmp.eq.s32.totalorder %s30, 0
      %p314 = por %p312, %p313
      %p315 = scmp.le.s32.totalorder 1, %s24
      %p316 = scmp.lt.s32.totalorder %s24, 3
      %p317 = pnand %p315, %p316
      %p318 = pneg %p317
      // Predicated region
      $region9: #{tpu_custom_call.1} parent=5 // pred_check
        _
      $region10: #{tpu_custom_call.1} parent=5 // pred_check_branch
        %320 = sbr.rel (%p317) target = $region12
      $region11: #{tpu_custom_call.1} parent=5 // pred_region
        %s321 = ssub.s32 %s24, 1
        // Predicated region
        $region13: #{tpu_custom_call.1} parent=11 // pred_check
          %p322 = pneg %p71
        $region14: #{tpu_custom_call.1} parent=11 // pred_check_branch
          %324 = sbr.rel (%p322) target = $region16
        $region15: #{tpu_custom_call.1} parent=11 // pred_region
          _
        $region16: #{tpu_custom_call.1} parent=11 // pred_fallthru
          _
        // Predicated region
        $region17: #{tpu_custom_call.1} parent=11 // pred_check
          %p325 = pneg %p92
        $region18: #{tpu_custom_call.1} parent=11 // pred_check_branch
          %327 = sbr.rel (%p325) target = $region20
        $region19: #{tpu_custom_call.1} parent=11 // pred_region
          _
        $region20: #{tpu_custom_call.1} parent=11 // pred_fallthru
          _
        // Predicated region
        $region21: #{tpu_custom_call.1} parent=11 // pred_check
          %p328 = pneg %p113
        $region22: #{tpu_custom_call.1} parent=11 // pred_check_branch
          %330 = sbr.rel (%p328) target = $region24
        $region23: #{tpu_custom_call.1} parent=11 // pred_region
          _
        $region24: #{tpu_custom_call.1} parent=11 // pred_fallthru
          _
        // Predicated region
        $region25: #{tpu_custom_call.1} parent=11 // pred_check
          %p331 = pneg %p134
        $region26: #{tpu_custom_call.1} parent=11 // pred_check_branch
          %333 = sbr.rel (%p331) target = $region28
        $region27: #{tpu_custom_call.1} parent=11 // pred_region
          _
        $region28: #{tpu_custom_call.1} parent=11 // pred_fallthru
          _
        // Predicated region
        $region29: #{tpu_custom_call.1} parent=11 // pred_check
          %p334 = pneg %p155
        $region30: #{tpu_custom_call.1} parent=11 // pred_check_branch
          %336 = sbr.rel (%p334) target = $region32
        $region31: #{tpu_custom_call.1} parent=11 // pred_region
          %338 = vsyncadd [#allocation4], 0
          %s339 = sshll.u32 %s5, 4
          %s340 = int_to_ptr.hbm [resolvable:$true] %s339
          %s341 = sshll.u32 [#allocation3], 4
          %s342 = int_to_ptr.vmem [resolvable:$true] %s341
          %347 = dma.hbm_to_vmem [thread:$0]  %s340, 6144, %s342, [#allocation4], 192, 192, 12
        $region32: #{tpu_custom_call.1} parent=11 // pred_fallthru
          _
        // Predicated region
        $region33: #{tpu_custom_call.1} parent=11 // pred_check
          %p348 = pneg %p176
        $region34: #{tpu_custom_call.1} parent=11 // pred_check_branch
          %350 = sbr.rel (%p348) target = $region36
        $region35: #{tpu_custom_call.1} parent=11 // pred_region
          _
        $region36: #{tpu_custom_call.1} parent=11 // pred_fallthru
          _
        // Predicated region
        $region37: #{tpu_custom_call.1} parent=11 // pred_check
          %p351 = pneg %p197
        $region38: #{tpu_custom_call.1} parent=11 // pred_check_branch
          %353 = sbr.rel (%p351) target = $region40
        $region39: #{tpu_custom_call.1} parent=11 // pred_region
          %355 = vsyncadd [#allocation7], 0
          %s356 = sshll.u32 %s7, 4
          %s357 = int_to_ptr.hbm [resolvable:$true] %s356
          %s358 = sshll.u32 [#allocation6], 4
          %s359 = int_to_ptr.vmem [resolvable:$true] %s358
          %364 = dma.hbm_to_vmem [thread:$0]  %s357, 2048, %s359, [#allocation7], 64, 64, 4
        $region40: #{tpu_custom_call.1} parent=11 // pred_fallthru
          _
        // Predicated region
        $region41: #{tpu_custom_call.1} parent=11 // pred_check
          %p365 = pneg %p218
        $region42: #{tpu_custom_call.1} parent=11 // pred_check_branch
          %367 = sbr.rel (%p365) target = $region44
        $region43: #{tpu_custom_call.1} parent=11 // pred_region
          _
        $region44: #{tpu_custom_call.1} parent=11 // pred_fallthru
          _
        // Predicated region
        $region45: #{tpu_custom_call.1} parent=11 // pred_check
          %p368 = pneg %p239
        $region46: #{tpu_custom_call.1} parent=11 // pred_check_branch
          %370 = sbr.rel (%p368) target = $region48
        $region47: #{tpu_custom_call.1} parent=11 // pred_region
          %372 = vsyncadd [#allocation7], 0
          %s373 = sshll.u32 %s9, 4
          %s374 = int_to_ptr.hbm [resolvable:$true] %s373
          %s375 = sshll.u32 [#allocation8], 4
          %s376 = int_to_ptr.vmem [resolvable:$true] %s375
          %381 = dma.hbm_to_vmem [thread:$0]  %s374, 4096, %s376, [#allocation7], 128, 128, 8
        $region48: #{tpu_custom_call.1} parent=11 // pred_fallthru
          _
        // Predicated region
        $region49: #{tpu_custom_call.1} parent=11 // pred_check
          %p382 = pneg %p260
        $region50: #{tpu_custom_call.1} parent=11 // pred_check_branch
          %384 = sbr.rel (%p382) target = $region52
        $region51: #{tpu_custom_call.1} parent=11 // pred_region
          _
        $region52: #{tpu_custom_call.1} parent=11 // pred_fallthru
          _
        // Predicated region
        $region53: #{tpu_custom_call.1} parent=11 // pred_check
          %p385 = pneg %p281
        $region54: #{tpu_custom_call.1} parent=11 // pred_check_branch
          %387 = sbr.rel (%p385) target = $region56
        $region55: #{tpu_custom_call.1} parent=11 // pred_region
          %389 = vsyncadd [#allocation10], 0
          %s390 = sshll.u32 %s11, 4
          %s391 = int_to_ptr.hbm [resolvable:$true] %s390
          %s392 = sshll.u32 [#allocation9], 4
          %s393 = int_to_ptr.vmem [resolvable:$true] %s392
          %398 = dma.hbm_to_vmem [thread:$0]  %s391, 4096, %s393, [#allocation10], 64, 64, 4
        $region56: #{tpu_custom_call.1} parent=11 // pred_fallthru
          _
      $region12: #{tpu_custom_call.1} parent=5 // pred_fallthru
        _
      %p399 = scmp.lt.s32.totalorder %s24, 2
      // Predicated region
      $region57: #{tpu_custom_call.1} parent=5 // pred_check
        %p400 = pneg %p399
      $region58: #{tpu_custom_call.1} parent=5 // pred_check_branch
        %402 = sbr.rel (%p400) target = $region60
      $region59: #{tpu_custom_call.1} parent=5 // pred_region
        // Predicated region
        $region61: #{tpu_custom_call.1} parent=59 // pred_check
          %p403 = pneg %p44
        $region62: #{tpu_custom_call.1} parent=59 // pred_check_branch
          %405 = sbr.rel (%p403) target = $region64
        $region63: #{tpu_custom_call.1} parent=59 // pred_region
          %p406 = scmp.lt.s32.totalorder %s24, 1
          %s407 = scalar_select %p406, %s24, 1
          %s408 = smul.addr %s407, 4
          %s409 = scalar_lea.vmem %s0, %s408
        $region64: #{tpu_custom_call.1} parent=59 // pred_fallthru
          _
      $region60: #{tpu_custom_call.1} parent=5 // pred_fallthru
        _
      %p410 = scmp.le.s32.totalorder 1, %s24
      %p411 = scmp.lt.s32.totalorder %s24, 3
      %p412 = pnand %p410, %p411
      %p413 = pneg %p412
      // Predicated region
      $region65: #{tpu_custom_call.1} parent=5 // pred_check
        _
      $region66: #{tpu_custom_call.1} parent=5 // pred_check_branch
        %415 = sbr.rel (%p412) target = $region68
      $region67: #{tpu_custom_call.1} parent=5 // pred_region
        %s416 = ssub.s32 %s24, 1
        // Predicated region
        $region69: #{tpu_custom_call.1} parent=67 // pred_check
          %p417 = pneg %p155
        $region70: #{tpu_custom_call.1} parent=67 // pred_check_branch
          %419 = sbr.rel (%p417) target = $region72
        $region71: #{tpu_custom_call.1} parent=67 // pred_region
          %421 = dma.done [#allocation4], 6144
        $region72: #{tpu_custom_call.1} parent=67 // pred_fallthru
          _
        // Predicated region
        $region73: #{tpu_custom_call.1} parent=67 // pred_check
          %p422 = pneg %p197
        $region74: #{tpu_custom_call.1} parent=67 // pred_check_branch
          %424 = sbr.rel (%p422) target = $region76
        $region75: #{tpu_custom_call.1} parent=67 // pred_region
          %426 = dma.done [#allocation7], 2048
        $region76: #{tpu_custom_call.1} parent=67 // pred_fallthru
          _
        // Predicated region
        $region77: #{tpu_custom_call.1} parent=67 // pred_check
          %p427 = pneg %p239
        $region78: #{tpu_custom_call.1} parent=67 // pred_check_branch
          %429 = sbr.rel (%p427) target = $region80
        $region79: #{tpu_custom_call.1} parent=67 // pred_region
          %431 = dma.done [#allocation7], 4096
        $region80: #{tpu_custom_call.1} parent=67 // pred_fallthru
          _
        // Predicated region
        $region81: #{tpu_custom_call.1} parent=67 // pred_check
          %p432 = pneg %p281
        $region82: #{tpu_custom_call.1} parent=67 // pred_check_branch
          %434 = sbr.rel (%p432) target = $region84
        $region83: #{tpu_custom_call.1} parent=67 // pred_region
          %436 = dma.done [#allocation10], 4096
        $region84: #{tpu_custom_call.1} parent=67 // pred_fallthru
          _
        %p437 = scmp.lt.s32.totalorder %s29, 1
        %s438 = scalar_select %p437, %s29, 1
        %s439 = smul.addr %s438, 4
        %s440 = scalar_lea.vmem %s0, %s439
        %p441 = pneg %p50
        %p442 = pneg %p47
        %p443 = pneg %p71
        %p444 = pneg %p68
        %p445 = pneg %p92
        %p446 = pneg %p89
        %p447 = pneg %p113
        %p448 = pneg %p110
        %p449 = pneg %p134
        %p450 = pneg %p131
        %p451 = pneg %p155
        %p452 = pneg %p152
        %p453 = pneg %p176
        %p454 = pneg %p173
        %p455 = pneg %p197
        %p456 = pneg %p194
        %p457 = pneg %p218
        %p458 = pneg %p215
        %p459 = pneg %p239
        %p460 = pneg %p236
        %p461 = pneg %p260
        %p462 = pneg %p257
        %p463 = pneg %p281
        %p464 = pneg %p278
        %p465 = pneg %p307
        %p466 = pneg %p304
        %s467 = sand.u32 %s294, 1
        %s468 = scalar_lea.sflag [#allocation5], %s467
        %s469 = sand.u32 %s294, 1
        %s470 = scalar_lea.vmem [#allocation11], %s469
        %p471 = scmp.lt.s32.totalorder %s29, 1
        %s472 = scalar_select %p471, %s29, 1
        %s473 = smul.addr %s472, 4
        %s474 = scalar_lea.vmem %s0, %s473
        %v476 = vld [vmem:[%s1] sm:$0xf]
        %v477 = vld [vmem:[%s1 + $0x4] sm:$0xf]
        %v478 = vld [vmem:[%s1 + $0x8] sm:$0xf]
        %v479 = vld [vmem:[%s1 + $0xc] sm:$0xf]
        %v480 = vld [vmem:[%s1 + $0x10] sm:$0xf]
        %v481 = vld [vmem:[%s1 + $0x14] sm:$0xf]
        %v482 = vld [vmem:[%s1 + $0x18] sm:$0xf]
        %v483 = vld [vmem:[%s1 + $0x1c] sm:$0xf]
        %v484 = vld [vmem:[%s1 + $0x20] sm:$0xf]
        %v485 = vld [vmem:[%s1 + $0x24] sm:$0xf]
        %v486 = vld [vmem:[%s1 + $0x28] sm:$0xf]
        %v487 = vld [vmem:[%s1 + $0x2c] sm:$0xf]
        %v488 = vld [vmem:[%s1 + $0x30] sm:$0xf]
        %v489 = vld [vmem:[%s1 + $0x34] sm:$0xf]
        %v490 = vld [vmem:[%s1 + $0x38] sm:$0xf]
        %v491 = vld [vmem:[%s1 + $0x3c] sm:$0xf]
        %v492 = vld [vmem:[%s2] sm:$0xf]
        %v493 = vld [vmem:[%s474] sm:$0xf]
        %v494 = vld [vmem:[%s3] sm:$0xf]
        %v495 = vld [vmem:[%s3 + $0x4] sm:$0xf]
        %v496 = vld [vmem:[%s3 + $0x8] sm:$0xf]
        %v497 = vld [vmem:[%s3 + $0xc] sm:$0xf]
        %v498 = vld [vmem:[%s4] sm:$0x1]
        %v500 = vperm.slane %v498, 0
        %v506 = vunpack.c.l.b16 %v494
        %v507 = vunpack.c.l.b16 %v495
        %v508 = vunpack.c.l.b16 %v496
        %v509 = vunpack.c.l.b16 %v497
        %v510 = vpack.c.b16 %v507, %v506
        %v511 = vpack.c.b16 %v509, %v508
        %vm514 = vcmask 261120
        %v516 = vsel %vm514, %v493, 0
        %518 = vmatpush.bf16.msra.mxu0 0
        %519 = vmatpush.bf16.msra.mxu0 0
        %520 = vmatpush.bf16.msra.mxu0 0
        %521 = vmatpush.bf16.msra.mxu0 0
        %522 = vmatpush.bf16.msra.mxu0 0
        %523 = vmatpush.bf16.msra.mxu0 0
        %524 = vmatpush.bf16.msra.mxu0 %v511
        %525 = vmatpush.bf16.msra.mxu0 %v510
        %526 = vmatmul.bf16.gmra.mxu0 %v516
        %v527 = vpop.f32.mrf.mxu0
        %v528 = vadd.f32 %v500, %v527
        %v529 = vpop.f32.mrf.mxu0
        %530 = vdwg.mxu0
        %v531 = vld [vmem:[%s8] sm:$0x3f]
        %v532 = vpack.c.bf16 %v528, %v528
        %v533 = vld [vmem:[#allocation3] sm:$0xff]
        %v534 = vld [vmem:[#allocation3 + $0x8] sm:$0xf]
        %v535 = vld [vmem:[#allocation3 + $0xc] sm:$0xff]
        %v536 = vld [vmem:[#allocation3 + $0x14] sm:$0xf]
        %v537 = vld [vmem:[#allocation3 + $0x18] sm:$0xff]
        %v538 = vld [vmem:[#allocation3 + $0x20] sm:$0xf]
        %v539 = vld [vmem:[#allocation3 + $0x24] sm:$0xff]
        %v540 = vld [vmem:[#allocation3 + $0x2c] sm:$0xf]
        %v541 = vld [vmem:[#allocation3 + $0x30] sm:$0xff]
        %v542 = vld [vmem:[#allocation3 + $0x38] sm:$0xf]
        %v543 = vld [vmem:[#allocation3 + $0x3c] sm:$0xff]
        %v544 = vld [vmem:[#allocation3 + $0x44] sm:$0xf]
        %v545 = vld [vmem:[#allocation3 + $0x48] sm:$0xff]
        %v546 = vld [vmem:[#allocation3 + $0x50] sm:$0xf]
        %v547 = vld [vmem:[#allocation3 + $0x54] sm:$0xff]
        %v548 = vld [vmem:[#allocation3 + $0x5c] sm:$0xf]
        %v549 = vld [vmem:[#allocation3 + $0x60] sm:$0xff]
        %v550 = vld [vmem:[#allocation3 + $0x68] sm:$0xf]
        %v551 = vld [vmem:[#allocation3 + $0x6c] sm:$0xff]
        %v552 = vld [vmem:[#allocation3 + $0x74] sm:$0xf]
        %v553 = vld [vmem:[#allocation3 + $0x78] sm:$0xff]
        %v554 = vld [vmem:[#allocation3 + $0x80] sm:$0xf]
        %v555 = vld [vmem:[#allocation3 + $0x84] sm:$0xff]
        %v556 = vld [vmem:[#allocation3 + $0x8c] sm:$0xf]
        %v557 = vld [vmem:[#allocation3 + $0x90] sm:$0xff]
        %v558 = vld [vmem:[#allocation3 + $0x98] sm:$0xf]
        %v559 = vld [vmem:[#allocation3 + $0x9c] sm:$0xff]
        %v560 = vld [vmem:[#allocation3 + $0xa4] sm:$0xf]
        %v561 = vld [vmem:[#allocation3 + $0xa8] sm:$0xff]
        %v562 = vld [vmem:[#allocation3 + $0xb0] sm:$0xf]
        %v563 = vld [vmem:[#allocation3 + $0xb4] sm:$0xff]
        %v564 = vld [vmem:[#allocation3 + $0xbc] sm:$0xf]
        %v565 = vld [vmem:[%s6] sm:$0x7]
        %v567 = vperm.slane %v565, 0
        %v568 = vperm.slane %v565, 1
        %v569 = vperm.slane %v565, 2
        %v605 = vunpack.c.l.b16 %v533
        %v606 = vunpack.c.h.b16 %v533
        %v607 = vunpack.c.l.b16 %v534
        %v608 = vunpack.c.l.b16 %v535
        %v609 = vunpack.c.h.b16 %v535
        %v610 = vunpack.c.l.b16 %v536
        %v611 = vunpack.c.l.b16 %v537
        %v612 = vunpack.c.h.b16 %v537
        %v613 = vunpack.c.l.b16 %v538
        %v614 = vunpack.c.l.b16 %v539
        %v615 = vunpack.c.h.b16 %v539
        %v616 = vunpack.c.l.b16 %v540
        %v617 = vunpack.c.l.b16 %v541
        %v618 = vunpack.c.h.b16 %v541
        %v619 = vunpack.c.l.b16 %v542
        %v620 = vunpack.c.l.b16 %v543
        %v621 = vunpack.c.h.b16 %v543
        %v622 = vunpack.c.l.b16 %v544
        %v623 = vunpack.c.l.b16 %v545
        %v624 = vunpack.c.h.b16 %v545
        %v625 = vunpack.c.l.b16 %v546
        %v626 = vunpack.c.l.b16 %v547
        %v627 = vunpack.c.h.b16 %v547
        %v628 = vunpack.c.l.b16 %v548
        %v629 = vunpack.c.l.b16 %v549
        %v630 = vunpack.c.h.b16 %v549
        %v631 = vunpack.c.l.b16 %v550
        %v632 = vunpack.c.l.b16 %v551
        %v633 = vunpack.c.h.b16 %v551
        %v634 = vunpack.c.l.b16 %v552
        %v635 = vunpack.c.l.b16 %v553
        %v636 = vunpack.c.h.b16 %v553
        %v637 = vunpack.c.l.b16 %v554
        %v638 = vunpack.c.l.b16 %v555
        %v639 = vunpack.c.h.b16 %v555
        %v640 = vunpack.c.l.b16 %v556
        %v641 = vunpack.c.l.b16 %v557
        %v642 = vunpack.c.h.b16 %v557
        %v643 = vunpack.c.l.b16 %v558
        %v644 = vunpack.c.l.b16 %v559
        %v645 = vunpack.c.h.b16 %v559
        %v646 = vunpack.c.l.b16 %v560
        %v647 = vunpack.c.l.b16 %v561
        %v648 = vunpack.c.h.b16 %v561
        %v649 = vunpack.c.l.b16 %v562
        %v650 = vunpack.c.l.b16 %v563
        %v651 = vunpack.c.h.b16 %v563
        %v652 = vunpack.c.l.b16 %v564
        %v653 = vpack.c.b16 %v608, %v605
        %v654 = vpack.c.b16 %v609, %v606
        %v655 = vpack.c.b16 %v610, %v607
        %v656 = vpack.c.b16 %v614, %v611
        %v657 = vpack.c.b16 %v615, %v612
        %v658 = vpack.c.b16 %v616, %v613
        %v659 = vpack.c.b16 %v620, %v617
        %v660 = vpack.c.b16 %v621, %v618
        %v661 = vpack.c.b16 %v622, %v619
        %v662 = vpack.c.b16 %v626, %v623
        %v663 = vpack.c.b16 %v627, %v624
        %v664 = vpack.c.b16 %v628, %v625
        %v665 = vpack.c.b16 %v632, %v629
        %v666 = vpack.c.b16 %v633, %v630
        %v667 = vpack.c.b16 %v634, %v631
        %v668 = vpack.c.b16 %v638, %v635
        %v669 = vpack.c.b16 %v639, %v636
        %v670 = vpack.c.b16 %v640, %v637
        %v671 = vpack.c.b16 %v644, %v641
        %v672 = vpack.c.b16 %v645, %v642
        %v673 = vpack.c.b16 %v646, %v643
        %v674 = vpack.c.b16 %v650, %v647
        %v675 = vpack.c.b16 %v651, %v648
        %v676 = vpack.c.b16 %v652, %v649
        %701 = vmatpush.bf16.msra.mxu0 %v674
        %702 = vmatpush.bf16.msra.mxu0 %v671
        %703 = vmatpush.bf16.msra.mxu0 %v668
        %704 = vmatpush.bf16.msra.mxu0 %v665
        %705 = vmatpush.bf16.msra.mxu0 %v662
        %706 = vmatpush.bf16.msra.mxu0 %v659
        %707 = vmatpush.bf16.msra.mxu0 %v656
        %708 = vmatpush.bf16.msra.mxu0 %v653
        %709 = vmatmul.bf16.gmra.mxu0 %v532
        %v710 = vpop.f32.mrf.mxu0
        %v711 = vadd.f32 %v567, %v710
        %v712 = vpop.f32.mrf.mxu0
        %713 = vdwg.mxu0
        %714 = vmatpush.bf16.msra.mxu0 %v675
        %715 = vmatpush.bf16.msra.mxu0 %v672
        %716 = vmatpush.bf16.msra.mxu0 %v669
        %717 = vmatpush.bf16.msra.mxu0 %v666
        %718 = vmatpush.bf16.msra.mxu0 %v663
        %719 = vmatpush.bf16.msra.mxu0 %v660
        %720 = vmatpush.bf16.msra.mxu0 %v657
        %721 = vmatpush.bf16.msra.mxu0 %v654
        %722 = vmatmul.bf16.gmra.mxu0 %v532
        %v723 = vpop.f32.mrf.mxu0
        %v724 = vadd.f32 %v568, %v723
        %v725 = vpop.f32.mrf.mxu0
        %726 = vdwg.mxu0
        %727 = vmatpush.bf16.msra.mxu0 %v676
        %728 = vmatpush.bf16.msra.mxu0 %v673
        %729 = vmatpush.bf16.msra.mxu0 %v670
        %730 = vmatpush.bf16.msra.mxu0 %v667
        %731 = vmatpush.bf16.msra.mxu0 %v664
        %732 = vmatpush.bf16.msra.mxu0 %v661
        %733 = vmatpush.bf16.msra.mxu0 %v658
        %734 = vmatpush.bf16.msra.mxu0 %v655
        %735 = vmatmul.bf16.gmra.mxu0 %v532
        %v736 = vpop.f32.mrf.mxu0
        %v737 = vadd.f32 %v569, %v736
        %v738 = vpop.f32.mrf.mxu0
        %739 = vdwg.mxu0
        %v741 = vrot.slane %v711, 1
        %v742 = vrot.slane %v711, 2
        %v743 = vrot.slane %v711, 3
        %v744 = vrot.slane %v711, 4
        %v745 = vrot.slane %v711, 5
        %v746 = vrot.slane %v711, 6
        %v747 = vrot.slane %v711, 7
        %v748 = vperm.slane %v711, 0
        %v749 = vperm.slane %v741, 0
        %v750 = vperm.slane %v742, 0
        %v751 = vperm.slane %v743, 0
        %v752 = vperm.slane %v744, 0
        %v753 = vperm.slane %v745, 0
        %v754 = vperm.slane %v746, 0
        %v755 = vperm.slane %v747, 0
        %v764 = vmul.f32 %v748, %v724
        %v765 = vmul.f32 %v749, %v724
        %v766 = vmul.f32 %v750, %v724
        %v767 = vmul.f32 %v751, %v724
        %v768 = vmul.f32 %v752, %v724
        %v769 = vmul.f32 %v753, %v724
        %v770 = vmul.f32 %v754, %v724
        %v771 = vmul.f32 %v755, %v724
        %v772 = vpack.c.bf16 %v765, %v764
        %v773 = vpack.c.bf16 %v767, %v766
        %v774 = vpack.c.bf16 %v769, %v768
        %v775 = vpack.c.bf16 %v771, %v770
        %v792 = vunpack.c.l.b16 %v476
        %v793 = vunpack.c.l.b16 %v477
        %v794 = vunpack.c.l.b16 %v478
        %v795 = vunpack.c.l.b16 %v479
        %v796 = vunpack.c.l.b16 %v480
        %v797 = vunpack.c.l.b16 %v481
        %v798 = vunpack.c.l.b16 %v482
        %v799 = vunpack.c.l.b16 %v483
        %v800 = vunpack.c.l.b16 %v484
        %v801 = vunpack.c.l.b16 %v485
        %v802 = vunpack.c.l.b16 %v486
        %v803 = vunpack.c.l.b16 %v487
        %v804 = vunpack.c.l.b16 %v488
        %v805 = vunpack.c.l.b16 %v489
        %v806 = vunpack.c.l.b16 %v490
        %v807 = vunpack.c.l.b16 %v491
        %v808 = vpack.c.b16 %v793, %v792
        %v809 = vpack.c.b16 %v795, %v794
        %v810 = vpack.c.b16 %v797, %v796
        %v811 = vpack.c.b16 %v799, %v798
        %v812 = vpack.c.b16 %v801, %v800
        %v813 = vpack.c.b16 %v803, %v802
        %v814 = vpack.c.b16 %v805, %v804
        %v815 = vpack.c.b16 %v807, %v806
        %824 = vmatpush.bf16.msra.mxu0 %v815
        %825 = vmatpush.bf16.msra.mxu0 %v814
        %826 = vmatpush.bf16.msra.mxu0 %v813
        %827 = vmatpush.bf16.msra.mxu0 %v812
        %828 = vmatpush.bf16.msra.mxu0 %v811
        %829 = vmatpush.bf16.msra.mxu0 %v810
        %830 = vmatpush.bf16.msra.mxu0 %v809
        %831 = vmatpush.bf16.msra.mxu0 %v808
        %832 = vmatmul.bf16.gmra.mxu0 %v772
        %v833 = vpop.f32.mrf.mxu0
        %v834 = vadd.f32 0.0, %v833
        %v835 = vpop.f32.mrf.mxu0
        %v836 = vadd.f32 0.0, %v835
        %837 = vmatmul.bf16.gmra.mxu0 %v773
        %v838 = vpop.f32.mrf.mxu0
        %v839 = vadd.f32 0.0, %v838
        %v840 = vpop.f32.mrf.mxu0
        %v841 = vadd.f32 0.0, %v840
        %842 = vmatmul.bf16.gmra.mxu0 %v774
        %v843 = vpop.f32.mrf.mxu0
        %v844 = vadd.f32 0.0, %v843
        %v845 = vpop.f32.mrf.mxu0
        %v846 = vadd.f32 0.0, %v845
        %847 = vmatmul.bf16.gmra.mxu0 %v775
        %v848 = vpop.f32.mrf.mxu0
        %v849 = vadd.f32 0.0, %v848
        %v850 = vpop.f32.mrf.mxu0
        %v851 = vadd.f32 0.0, %v850
        %852 = vdwg.mxu0
        %vm853 = vcmask 64512
        %v854 = vsel %vm853, %v834, -inf
        %v855 = vrot.slane %v854, 4
        %v856 = vmax.f32 %v854, %v855
        %v857 = vrot.slane %v856, 2
        %v858 = vmax.f32 %v856, %v857
        %v859 = vrot.slane %v858, 1
        %v860 = vmax.f32 %v858, %v859
        %v861 = vsel %vm853, %v836, -inf
        %v862 = vrot.slane %v861, 4
        %v863 = vmax.f32 %v861, %v862
        %v864 = vrot.slane %v863, 2
        %v865 = vmax.f32 %v863, %v864
        %v866 = vrot.slane %v865, 1
        %v867 = vmax.f32 %v865, %v866
        %v868 = vsel %vm853, %v839, -inf
        %v869 = vrot.slane %v868, 4
        %v870 = vmax.f32 %v868, %v869
        %v871 = vrot.slane %v870, 2
        %v872 = vmax.f32 %v870, %v871
        %v873 = vrot.slane %v872, 1
        %v874 = vmax.f32 %v872, %v873
        %v875 = vsel %vm853, %v841, -inf
        %v876 = vrot.slane %v875, 4
        %v877 = vmax.f32 %v875, %v876
        %v878 = vrot.slane %v877, 2
        %v879 = vmax.f32 %v877, %v878
        %v880 = vrot.slane %v879, 1
        %v881 = vmax.f32 %v879, %v880
        %v882 = vsel %vm853, %v844, -inf
        %v883 = vrot.slane %v882, 4
        %v884 = vmax.f32 %v882, %v883
        %v885 = vrot.slane %v884, 2
        %v886 = vmax.f32 %v884, %v885
        %v887 = vrot.slane %v886, 1
        %v888 = vmax.f32 %v886, %v887
        %v889 = vsel %vm853, %v846, -inf
        %v890 = vrot.slane %v889, 4
        %v891 = vmax.f32 %v889, %v890
        %v892 = vrot.slane %v891, 2
        %v893 = vmax.f32 %v891, %v892
        %v894 = vrot.slane %v893, 1
        %v895 = vmax.f32 %v893, %v894
        %v896 = vsel %vm853, %v849, -inf
        %v897 = vrot.slane %v896, 4
        %v898 = vmax.f32 %v896, %v897
        %v899 = vrot.slane %v898, 2
        %v900 = vmax.f32 %v898, %v899
        %v901 = vrot.slane %v900, 1
        %v902 = vmax.f32 %v900, %v901
        %v903 = vsel %vm853, %v851, -inf
        %v904 = vrot.slane %v903, 4
        %v905 = vmax.f32 %v903, %v904
        %v906 = vrot.slane %v905, 2
        %v907 = vmax.f32 %v905, %v906
        %v908 = vrot.slane %v907, 1
        %v909 = vmax.f32 %v907, %v908
        %v910 = vsub.f32 %v834, %v860
        %v911 = vsub.f32 %v836, %v867
        %v912 = vsub.f32 %v839, %v874
        %v913 = vsub.f32 %v841, %v881
        %v914 = vsub.f32 %v844, %v888
        %v915 = vsub.f32 %v846, %v895
        %v916 = vsub.f32 %v849, %v902
        %v917 = vsub.f32 %v851, %v909
        %v918 = vmul.f32 %v910, 1.442695
        %v919 = vpow.pop %v918
        %v920 = vmul.f32 %v911, 1.442695
        %v921 = vpow.pop %v920
        %v922 = vmul.f32 %v912, 1.442695
        %v923 = vpow.pop %v922
        %v924 = vmul.f32 %v913, 1.442695
        %v925 = vpow.pop %v924
        %v926 = vmul.f32 %v914, 1.442695
        %v927 = vpow.pop %v926
        %v928 = vmul.f32 %v915, 1.442695
        %v929 = vpow.pop %v928
        %v930 = vmul.f32 %v916, 1.442695
        %v931 = vpow.pop %v930
        %v932 = vmul.f32 %v917, 1.442695
        %v933 = vpow.pop %v932
        %v934 = vsel %vm853, %v919, 0.0
        %v935 = vrot.slane %v934, 4
        %v936 = vadd.f32 %v934, %v935
        %v937 = vrot.slane %v936, 2
        %v938 = vadd.f32 %v936, %v937
        %v939 = vrot.slane %v938, 1
        %v940 = vadd.f32 %v938, %v939
        %v941 = vsel %vm853, %v921, 0.0
        %v942 = vrot.slane %v941, 4
        %v943 = vadd.f32 %v941, %v942
        %v944 = vrot.slane %v943, 2
        %v945 = vadd.f32 %v943, %v944
        %v946 = vrot.slane %v945, 1
        %v947 = vadd.f32 %v945, %v946
        %v948 = vsel %vm853, %v923, 0.0
        %v949 = vrot.slane %v948, 4
        %v950 = vadd.f32 %v948, %v949
        %v951 = vrot.slane %v950, 2
        %v952 = vadd.f32 %v950, %v951
        %v953 = vrot.slane %v952, 1
        %v954 = vadd.f32 %v952, %v953
        %v955 = vsel %vm853, %v925, 0.0
        %v956 = vrot.slane %v955, 4
        %v957 = vadd.f32 %v955, %v956
        %v958 = vrot.slane %v957, 2
        %v959 = vadd.f32 %v957, %v958
        %v960 = vrot.slane %v959, 1
        %v961 = vadd.f32 %v959, %v960
        %v962 = vsel %vm853, %v927, 0.0
        %v963 = vrot.slane %v962, 4
        %v964 = vadd.f32 %v962, %v963
        %v965 = vrot.slane %v964, 2
        %v966 = vadd.f32 %v964, %v965
        %v967 = vrot.slane %v966, 1
        %v968 = vadd.f32 %v966, %v967
        %v969 = vsel %vm853, %v929, 0.0
        %v970 = vrot.slane %v969, 4
        %v971 = vadd.f32 %v969, %v970
        %v972 = vrot.slane %v971, 2
        %v973 = vadd.f32 %v971, %v972
        %v974 = vrot.slane %v973, 1
        %v975 = vadd.f32 %v973, %v974
        %v976 = vsel %vm853, %v931, 0.0
        %v977 = vrot.slane %v976, 4
        %v978 = vadd.f32 %v976, %v977
        %v979 = vrot.slane %v978, 2
        %v980 = vadd.f32 %v978, %v979
        %v981 = vrot.slane %v980, 1
        %v982 = vadd.f32 %v980, %v981
        %v983 = vsel %vm853, %v933, 0.0
        %v984 = vrot.slane %v983, 4
        %v985 = vadd.f32 %v983, %v984
        %v986 = vrot.slane %v985, 2
        %v987 = vadd.f32 %v985, %v986
        %v988 = vrot.slane %v987, 1
        %v989 = vadd.f32 %v987, %v988
        %v990 = vrcp.pop %v940
        %v991 = vrcp.pop %v947
        %v992 = vrcp.pop %v954
        %v993 = vrcp.pop %v961
        %v994 = vrcp.pop %v968
        %v995 = vrcp.pop %v975
        %v996 = vrcp.pop %v982
        %v997 = vrcp.pop %v989
        %v998 = vmul.f32 %v919, %v990
        %v999 = vmul.f32 %v921, %v991
        %v1000 = vmul.f32 %v923, %v992
        %v1001 = vmul.f32 %v925, %v993
        %v1002 = vmul.f32 %v927, %v994
        %v1003 = vmul.f32 %v929, %v995
        %v1004 = vmul.f32 %v931, %v996
        %v1005 = vmul.f32 %v933, %v997
        %v1006 = vpack.c.bf16 %v999, %v998
        %v1007 = vpack.c.bf16 %v1001, %v1000
        %v1008 = vpack.c.bf16 %v1003, %v1002
        %v1009 = vpack.c.bf16 %v1005, %v1004
        %v1011 = vsel %vm853, %v1006, 0
        %v1014 = vsel %vm853, %v1007, 0
        %v1017 = vsel %vm853, %v1008, 0
        %v1020 = vsel %vm853, %v1009, 0
        %vm1022 = vcmask 1043456
        %v1024 = vsel %vm1022, %v492, 0
        %1026 = vmatpush.bf16.msra.mxu0 0
        %1027 = vmatpush.bf16.msra.mxu0 0
        %1028 = vmatpush.bf16.msra.mxu0 0
        %1029 = vmatpush.bf16.msra.mxu0 0
        %1030 = vmatpush.bf16.msra.mxu0 0
        %1031 = vmatpush.bf16.msra.mxu0 0
        %1032 = vmatpush.bf16.msra.mxu0 0
        %1033 = vmatpush.bf16.msra.mxu0 %v1024
        %1034 = vmatmul.bf16.gmra.mxu0 %v1011
        %v1035 = vpop.f32.mrf.mxu0
        %v1036 = vadd.f32 0.0, %v1035
        %v1037 = vpop.f32.mrf.mxu0
        %v1038 = vadd.f32 0.0, %v1037
        %1039 = vmatmul.bf16.gmra.mxu0 %v1014
        %v1040 = vpop.f32.mrf.mxu0
        %v1041 = vadd.f32 0.0, %v1040
        %v1042 = vpop.f32.mrf.mxu0
        %v1043 = vadd.f32 0.0, %v1042
        %1044 = vmatmul.bf16.gmra.mxu0 %v1017
        %v1045 = vpop.f32.mrf.mxu0
        %v1046 = vadd.f32 0.0, %v1045
        %v1047 = vpop.f32.mrf.mxu0
        %v1048 = vadd.f32 0.0, %v1047
        %1049 = vmatmul.bf16.gmra.mxu0 %v1020
        %v1050 = vpop.f32.mrf.mxu0
        %v1051 = vadd.f32 0.0, %v1050
        %v1052 = vpop.f32.mrf.mxu0
        %v1053 = vadd.f32 0.0, %v1052
        %1054 = vdwg.mxu0
        %v1055 = vmul.f32 %v1036, %v737
        %v1056 = vmul.f32 %v1038, %v737
        %v1057 = vmul.f32 %v1041, %v737
        %v1058 = vmul.f32 %v1043, %v737
        %v1059 = vmul.f32 %v1046, %v737
        %v1060 = vmul.f32 %v1048, %v737
        %v1061 = vmul.f32 %v1051, %v737
        %v1062 = vmul.f32 %v1053, %v737
        %v1063 = vrot.slane %v1055, 4
        %v1064 = vadd.f32 %v1055, %v1063
        %v1065 = vrot.slane %v1064, 2
        %v1066 = vadd.f32 %v1064, %v1065
        %v1067 = vrot.slane %v1066, 1
        %v1068 = vadd.f32 %v1066, %v1067
        %v1069 = vrot.slane %v1056, 4
        %v1070 = vadd.f32 %v1056, %v1069
        %v1071 = vrot.slane %v1070, 2
        %v1072 = vadd.f32 %v1070, %v1071
        %v1073 = vrot.slane %v1072, 1
        %v1074 = vadd.f32 %v1072, %v1073
        %v1075 = vrot.slane %v1057, 4
        %v1076 = vadd.f32 %v1057, %v1075
        %v1077 = vrot.slane %v1076, 2
        %v1078 = vadd.f32 %v1076, %v1077
        %v1079 = vrot.slane %v1078, 1
        %v1080 = vadd.f32 %v1078, %v1079
        %v1081 = vrot.slane %v1058, 4
        %v1082 = vadd.f32 %v1058, %v1081
        %v1083 = vrot.slane %v1082, 2
        %v1084 = vadd.f32 %v1082, %v1083
        %v1085 = vrot.slane %v1084, 1
        %v1086 = vadd.f32 %v1084, %v1085
        %v1087 = vrot.slane %v1059, 4
        %v1088 = vadd.f32 %v1059, %v1087
        %v1089 = vrot.slane %v1088, 2
        %v1090 = vadd.f32 %v1088, %v1089
        %v1091 = vrot.slane %v1090, 1
        %v1092 = vadd.f32 %v1090, %v1091
        %v1093 = vrot.slane %v1060, 4
        %v1094 = vadd.f32 %v1060, %v1093
        %v1095 = vrot.slane %v1094, 2
        %v1096 = vadd.f32 %v1094, %v1095
        %v1097 = vrot.slane %v1096, 1
        %v1098 = vadd.f32 %v1096, %v1097
        %v1099 = vrot.slane %v1061, 4
        %v1100 = vadd.f32 %v1061, %v1099
        %v1101 = vrot.slane %v1100, 2
        %v1102 = vadd.f32 %v1100, %v1101
        %v1103 = vrot.slane %v1102, 1
        %v1104 = vadd.f32 %v1102, %v1103
        %v1105 = vrot.slane %v1062, 4
        %v1106 = vadd.f32 %v1062, %v1105
        %v1107 = vrot.slane %v1106, 2
        %v1108 = vadd.f32 %v1106, %v1107
        %v1109 = vrot.slane %v1108, 1
        %v1110 = vadd.f32 %v1108, %v1109
        %vm1119 = vcmask 1041409
        %v1120 = vsel %vm1119, %v1074, %v1068
        %vm1121 = vcmask 1042434
        %v1122 = vsel %vm1121, %v1080, %v1120
        %vm1123 = vcmask 1043459
        %v1124 = vsel %vm1123, %v1086, %v1122
        %vm1125 = vcmask 1044484
        %v1126 = vsel %vm1125, %v1092, %v1124
        %vm1127 = vcmask 1045509
        %v1128 = vsel %vm1127, %v1098, %v1126
        %vm1129 = vcmask 1046534
        %v1130 = vsel %vm1129, %v1104, %v1128
        %vm1131 = vcmask 1047559
        %v1132 = vsel %vm1131, %v1110, %v1130
        %1134 = vst [vmem:[#allocation2] sm:$0xff] %v1132
        %v1135 = vld [vmem:[#allocation2] sm:$0xff]
        %v1136 = vpack.c.bf16 %v1135, %v1135
        %v1137 = vld [vmem:[#allocation6] sm:$0xf]
        %v1138 = vld [vmem:[#allocation6 + $0x4] sm:$0xf]
        %v1139 = vld [vmem:[#allocation6 + $0x8] sm:$0xf]
        %v1140 = vld [vmem:[#allocation6 + $0xc] sm:$0xf]
        %v1141 = vld [vmem:[#allocation6 + $0x10] sm:$0xf]
        %v1142 = vld [vmem:[#allocation6 + $0x14] sm:$0xf]
        %v1143 = vld [vmem:[#allocation6 + $0x18] sm:$0xf]
        %v1144 = vld [vmem:[#allocation6 + $0x1c] sm:$0xf]
        %v1145 = vld [vmem:[#allocation6 + $0x20] sm:$0xf]
        %v1146 = vld [vmem:[#allocation6 + $0x24] sm:$0xf]
        %v1147 = vld [vmem:[#allocation6 + $0x28] sm:$0xf]
        %v1148 = vld [vmem:[#allocation6 + $0x2c] sm:$0xf]
        %v1149 = vld [vmem:[#allocation6 + $0x30] sm:$0xf]
        %v1150 = vld [vmem:[#allocation6 + $0x34] sm:$0xf]
        %v1151 = vld [vmem:[#allocation6 + $0x38] sm:$0xf]
        %v1152 = vld [vmem:[#allocation6 + $0x3c] sm:$0xf]
        %v1153 = vperm.slane %v531, 0
        %v1170 = vunpack.c.l.b16 %v1137
        %v1171 = vunpack.c.l.b16 %v1138
        %v1172 = vunpack.c.l.b16 %v1139
        %v1173 = vunpack.c.l.b16 %v1140
        %v1174 = vunpack.c.l.b16 %v1141
        %v1175 = vunpack.c.l.b16 %v1142
        %v1176 = vunpack.c.l.b16 %v1143
        %v1177 = vunpack.c.l.b16 %v1144
        %v1178 = vunpack.c.l.b16 %v1145
        %v1179 = vunpack.c.l.b16 %v1146
        %v1180 = vunpack.c.l.b16 %v1147
        %v1181 = vunpack.c.l.b16 %v1148
        %v1182 = vunpack.c.l.b16 %v1149
        %v1183 = vunpack.c.l.b16 %v1150
        %v1184 = vunpack.c.l.b16 %v1151
        %v1185 = vunpack.c.l.b16 %v1152
        %v1186 = vpack.c.b16 %v1171, %v1170
        %v1187 = vpack.c.b16 %v1173, %v1172
        %v1188 = vpack.c.b16 %v1175, %v1174
        %v1189 = vpack.c.b16 %v1177, %v1176
        %v1190 = vpack.c.b16 %v1179, %v1178
        %v1191 = vpack.c.b16 %v1181, %v1180
        %v1192 = vpack.c.b16 %v1183, %v1182
        %v1193 = vpack.c.b16 %v1185, %v1184
        %1202 = vmatpush.bf16.msra.mxu0 %v1193
        %1203 = vmatpush.bf16.msra.mxu0 %v1192
        %1204 = vmatpush.bf16.msra.mxu0 %v1191
        %1205 = vmatpush.bf16.msra.mxu0 %v1190
        %1206 = vmatpush.bf16.msra.mxu0 %v1189
        %1207 = vmatpush.bf16.msra.mxu0 %v1188
        %1208 = vmatpush.bf16.msra.mxu0 %v1187
        %1209 = vmatpush.bf16.msra.mxu0 %v1186
        %1210 = vmatmul.bf16.gmra.mxu0 %v1136
        %v1211 = vpop.f32.mrf.mxu0
        %v1212 = vadd.f32 %v1153, %v1211
        %v1213 = vpop.f32.mrf.mxu0
        %1214 = vdwg.mxu0
        %v1215 = vadd.f32 %v528, %v1212
        %1216 = vadd.xlane.f32.xlu0 %v1215
        %v1217 = vpop.xlane.xlu0 %1216
        %v1218 = vrcp.pop 128.0
        %v1219 = vmul.f32 128.0, %v1218
        %v1220 = vsub.f32 1.0, %v1219
        %v1221 = vmul.f32 %v1218, %v1220
        %v1222 = vadd.f32 %v1218, %v1221
        %vm1223 = vweird.f32 %v1218
        %v1224 = vsel %vm1223, %v1218, %v1222
        %v1225 = vmul.f32 %v1217, %v1224
        %v1226 = vsub.f32 %v1215, %v1225
        %v1227 = vmul.f32 %v1226, %v1226
        %1228 = vadd.xlane.f32.xlu0 %v1227
        %v1229 = vpop.xlane.xlu0 %1228
        %v1230 = vmul.f32 %v1229, %v1224
        %v1231 = vadd.f32 %v1230, 1e-05
        %v1232 = vrsqrt.pop %v1231
        %v1233 = vmul.f32 %v1232, %v1231
        %v1234 = vmul.f32 %v1233, %v1232
        %v1235 = vmul.f32 0.5, %v1234
        %v1236 = vsub.f32 1.5, %v1235
        %v1237 = vmul.f32 %v1232, %v1236
        %vm1238 = vweird.f32 %v1231
        %vm1239 = vweird.f32 %v1232
        %vm1240 = vmor %vm1238, %vm1239
        %v1241 = vsel %vm1240, %v1232, %v1237
        %v1242 = vmul.f32 %v1226, %v1241
        %v1243 = vperm.slane %v531, 1
        %v1244 = vmul.f32 %v1242, %v1243
        %v1245 = vperm.slane %v531, 2
        %v1246 = vadd.f32 %v1244, %v1245
        %v1247 = vpack.c.bf16 %v1246, %v1246
        %v1248 = vld [vmem:[#allocation8] sm:$0xff]
        %v1249 = vld [vmem:[#allocation8 + $0x8] sm:$0xff]
        %v1250 = vld [vmem:[#allocation8 + $0x10] sm:$0xff]
        %v1251 = vld [vmem:[#allocation8 + $0x18] sm:$0xff]
        %v1252 = vld [vmem:[#allocation8 + $0x20] sm:$0xff]
        %v1253 = vld [vmem:[#allocation8 + $0x28] sm:$0xff]
        %v1254 = vld [vmem:[#allocation8 + $0x30] sm:$0xff]
        %v1255 = vld [vmem:[#allocation8 + $0x38] sm:$0xff]
        %v1256 = vld [vmem:[#allocation8 + $0x40] sm:$0xff]
        %v1257 = vld [vmem:[#allocation8 + $0x48] sm:$0xff]
        %v1258 = vld [vmem:[#allocation8 + $0x50] sm:$0xff]
        %v1259 = vld [vmem:[#allocation8 + $0x58] sm:$0xff]
        %v1260 = vld [vmem:[#allocation8 + $0x60] sm:$0xff]
        %v1261 = vld [vmem:[#allocation8 + $0x68] sm:$0xff]
        %v1262 = vld [vmem:[#allocation8 + $0x70] sm:$0xff]
        %v1263 = vld [vmem:[#allocation8 + $0x78] sm:$0xff]
        %v1264 = vld [vmem:[%s10] sm:$0x3]
        %v1266 = vperm.slane %v1264, 0
        %v1267 = vperm.slane %v1264, 1
        %v1286 = vunpack.c.l.b16 %v1248
        %v1287 = vunpack.c.h.b16 %v1248
        %v1288 = vunpack.c.l.b16 %v1249
        %v1289 = vunpack.c.h.b16 %v1249
        %v1290 = vunpack.c.l.b16 %v1250
        %v1291 = vunpack.c.h.b16 %v1250
        %v1292 = vunpack.c.l.b16 %v1251
        %v1293 = vunpack.c.h.b16 %v1251
        %v1294 = vunpack.c.l.b16 %v1252
        %v1295 = vunpack.c.h.b16 %v1252
        %v1296 = vunpack.c.l.b16 %v1253
        %v1297 = vunpack.c.h.b16 %v1253
        %v1298 = vunpack.c.l.b16 %v1254
        %v1299 = vunpack.c.h.b16 %v1254
        %v1300 = vunpack.c.l.b16 %v1255
        %v1301 = vunpack.c.h.b16 %v1255
        %v1302 = vunpack.c.l.b16 %v1256
        %v1303 = vunpack.c.h.b16 %v1256
        %v1304 = vunpack.c.l.b16 %v1257
        %v1305 = vunpack.c.h.b16 %v1257
        %v1306 = vunpack.c.l.b16 %v1258
        %v1307 = vunpack.c.h.b16 %v1258
        %v1308 = vunpack.c.l.b16 %v1259
        %v1309 = vunpack.c.h.b16 %v1259
        %v1310 = vunpack.c.l.b16 %v1260
        %v1311 = vunpack.c.h.b16 %v1260
        %v1312 = vunpack.c.l.b16 %v1261
        %v1313 = vunpack.c.h.b16 %v1261
        %v1314 = vunpack.c.l.b16 %v1262
        %v1315 = vunpack.c.h.b16 %v1262
        %v1316 = vunpack.c.l.b16 %v1263
        %v1317 = vunpack.c.h.b16 %v1263
        %v1318 = vpack.c.b16 %v1288, %v1286
        %v1319 = vpack.c.b16 %v1289, %v1287
        %v1320 = vpack.c.b16 %v1292, %v1290
        %v1321 = vpack.c.b16 %v1293, %v1291
        %v1322 = vpack.c.b16 %v1296, %v1294
        %v1323 = vpack.c.b16 %v1297, %v1295
        %v1324 = vpack.c.b16 %v1300, %v1298
        %v1325 = vpack.c.b16 %v1301, %v1299
        %v1326 = vpack.c.b16 %v1304, %v1302
        %v1327 = vpack.c.b16 %v1305, %v1303
        %v1328 = vpack.c.b16 %v1308, %v1306
        %v1329 = vpack.c.b16 %v1309, %v1307
        %v1330 = vpack.c.b16 %v1312, %v1310
        %v1331 = vpack.c.b16 %v1313, %v1311
        %v1332 = vpack.c.b16 %v1316, %v1314
        %v1333 = vpack.c.b16 %v1317, %v1315
        %1350 = vmatpush.bf16.msra.mxu0 %v1332
        %1351 = vmatpush.bf16.msra.mxu0 %v1330
        %1352 = vmatpush.bf16.msra.mxu0 %v1328
        %1353 = vmatpush.bf16.msra.mxu0 %v1326
        %1354 = vmatpush.bf16.msra.mxu0 %v1324
        %1355 = vmatpush.bf16.msra.mxu0 %v1322
        %1356 = vmatpush.bf16.msra.mxu0 %v1320
        %1357 = vmatpush.bf16.msra.mxu0 %v1318
        %1358 = vmatmul.bf16.gmra.mxu0 %v1247
        %v1359 = vpop.f32.mrf.mxu0
        %v1360 = vadd.f32 %v1266, %v1359
        %v1361 = vpop.f32.mrf.mxu0
        %1362 = vdwg.mxu0
        %1363 = vmatpush.bf16.msra.mxu0 %v1333
        %1364 = vmatpush.bf16.msra.mxu0 %v1331
        %1365 = vmatpush.bf16.msra.mxu0 %v1329
        %1366 = vmatpush.bf16.msra.mxu0 %v1327
        %1367 = vmatpush.bf16.msra.mxu0 %v1325
        %1368 = vmatpush.bf16.msra.mxu0 %v1323
        %1369 = vmatpush.bf16.msra.mxu0 %v1321
        %1370 = vmatpush.bf16.msra.mxu0 %v1319
        %1371 = vmatmul.bf16.gmra.mxu0 %v1247
        %v1372 = vpop.f32.mrf.mxu0
        %v1373 = vadd.f32 %v1267, %v1372
        %v1374 = vpop.f32.mrf.mxu0
        %1375 = vdwg.mxu0
        %v1376 = vmax.f32 %v1360, 0.0
        %v1377 = vmax.f32 %v1373, 0.0
        %v1378 = vpack.c.bf16 %v1376, %v1376
        %v1379 = vpack.c.bf16 %v1377, %v1377
        %v1380 = vld [vmem:[#allocation9] sm:$0xf]
        %v1381 = vld [vmem:[#allocation9 + $0x4] sm:$0xf]
        %v1382 = vld [vmem:[#allocation9 + $0x8] sm:$0xf]
        %v1383 = vld [vmem:[#allocation9 + $0xc] sm:$0xf]
        %v1384 = vld [vmem:[#allocation9 + $0x10] sm:$0xf]
        %v1385 = vld [vmem:[#allocation9 + $0x14] sm:$0xf]
        %v1386 = vld [vmem:[#allocation9 + $0x18] sm:$0xf]
        %v1387 = vld [vmem:[#allocation9 + $0x1c] sm:$0xf]
        %v1388 = vld [vmem:[#allocation9 + $0x20] sm:$0xf]
        %v1389 = vld [vmem:[#allocation9 + $0x24] sm:$0xf]
        %v1390 = vld [vmem:[#allocation9 + $0x28] sm:$0xf]
        %v1391 = vld [vmem:[#allocation9 + $0x2c] sm:$0xf]
        %v1392 = vld [vmem:[#allocation9 + $0x30] sm:$0xf]
        %v1393 = vld [vmem:[#allocation9 + $0x34] sm:$0xf]
        %v1394 = vld [vmem:[#allocation9 + $0x38] sm:$0xf]
        %v1395 = vld [vmem:[#allocation9 + $0x3c] sm:$0xf]
        %v1396 = vld [vmem:[#allocation9 + $0x40] sm:$0xf]
        %v1397 = vld [vmem:[#allocation9 + $0x44] sm:$0xf]
        %v1398 = vld [vmem:[#allocation9 + $0x48] sm:$0xf]
        %v1399 = vld [vmem:[#allocation9 + $0x4c] sm:$0xf]
        %v1400 = vld [vmem:[#allocation9 + $0x50] sm:$0xf]
        %v1401 = vld [vmem:[#allocation9 + $0x54] sm:$0xf]
        %v1402 = vld [vmem:[#allocation9 + $0x58] sm:$0xf]
        %v1403 = vld [vmem:[#allocation9 + $0x5c] sm:$0xf]
        %v1404 = vld [vmem:[#allocation9 + $0x60] sm:$0xf]
        %v1405 = vld [vmem:[#allocation9 + $0x64] sm:$0xf]
        %v1406 = vld [vmem:[#allocation9 + $0x68] sm:$0xf]
        %v1407 = vld [vmem:[#allocation9 + $0x6c] sm:$0xf]
        %v1408 = vld [vmem:[#allocation9 + $0x70] sm:$0xf]
        %v1409 = vld [vmem:[#allocation9 + $0x74] sm:$0xf]
        %v1410 = vld [vmem:[#allocation9 + $0x78] sm:$0xf]
        %v1411 = vld [vmem:[#allocation9 + $0x7c] sm:$0xf]
        %v1412 = vperm.slane %v531, 5
        %v1445 = vunpack.c.l.b16 %v1380
        %v1446 = vunpack.c.l.b16 %v1381
        %v1447 = vunpack.c.l.b16 %v1382
        %v1448 = vunpack.c.l.b16 %v1383
        %v1449 = vunpack.c.l.b16 %v1384
        %v1450 = vunpack.c.l.b16 %v1385
        %v1451 = vunpack.c.l.b16 %v1386
        %v1452 = vunpack.c.l.b16 %v1387
        %v1453 = vunpack.c.l.b16 %v1388
        %v1454 = vunpack.c.l.b16 %v1389
        %v1455 = vunpack.c.l.b16 %v1390
        %v1456 = vunpack.c.l.b16 %v1391
        %v1457 = vunpack.c.l.b16 %v1392
        %v1458 = vunpack.c.l.b16 %v1393
        %v1459 = vunpack.c.l.b16 %v1394
        %v1460 = vunpack.c.l.b16 %v1395
        %v1461 = vunpack.c.l.b16 %v1396
        %v1462 = vunpack.c.l.b16 %v1397
        %v1463 = vunpack.c.l.b16 %v1398
        %v1464 = vunpack.c.l.b16 %v1399
        %v1465 = vunpack.c.l.b16 %v1400
        %v1466 = vunpack.c.l.b16 %v1401
        %v1467 = vunpack.c.l.b16 %v1402
        %v1468 = vunpack.c.l.b16 %v1403
        %v1469 = vunpack.c.l.b16 %v1404
        %v1470 = vunpack.c.l.b16 %v1405
        %v1471 = vunpack.c.l.b16 %v1406
        %v1472 = vunpack.c.l.b16 %v1407
        %v1473 = vunpack.c.l.b16 %v1408
        %v1474 = vunpack.c.l.b16 %v1409
        %v1475 = vunpack.c.l.b16 %v1410
        %v1476 = vunpack.c.l.b16 %v1411
        %v1477 = vpack.c.b16 %v1446, %v1445
        %v1478 = vpack.c.b16 %v1448, %v1447
        %v1479 = vpack.c.b16 %v1450, %v1449
        %v1480 = vpack.c.b16 %v1452, %v1451
        %v1481 = vpack.c.b16 %v1454, %v1453
        %v1482 = vpack.c.b16 %v1456, %v1455
        %v1483 = vpack.c.b16 %v1458, %v1457
        %v1484 = vpack.c.b16 %v1460, %v1459
        %v1485 = vpack.c.b16 %v1462, %v1461
        %v1486 = vpack.c.b16 %v1464, %v1463
        %v1487 = vpack.c.b16 %v1466, %v1465
        %v1488 = vpack.c.b16 %v1468, %v1467
        %v1489 = vpack.c.b16 %v1470, %v1469
        %v1490 = vpack.c.b16 %v1472, %v1471
        %v1491 = vpack.c.b16 %v1474, %v1473
        %v1492 = vpack.c.b16 %v1476, %v1475
        %1509 = vmatpush.bf16.msra.mxu0 %v1484
        %1510 = vmatpush.bf16.msra.mxu0 %v1483
        %1511 = vmatpush.bf16.msra.mxu0 %v1482
        %1512 = vmatpush.bf16.msra.mxu0 %v1481
        %1513 = vmatpush.bf16.msra.mxu0 %v1480
        %1514 = vmatpush.bf16.msra.mxu0 %v1479
        %1515 = vmatpush.bf16.msra.mxu0 %v1478
        %1516 = vmatpush.bf16.msra.mxu0 %v1477
        %1517 = vmatmul.bf16.gmra.mxu0 %v1378
        %v1518 = vpop.f32.mrf.mxu0
        %v1519 = vadd.f32 %v1412, %v1518
        %v1520 = vpop.f32.mrf.mxu0
        %1521 = vdwg.mxu0
        %1522 = vmatpush.bf16.msra.mxu0 %v1492
        %1523 = vmatpush.bf16.msra.mxu0 %v1491
        %1524 = vmatpush.bf16.msra.mxu0 %v1490
        %1525 = vmatpush.bf16.msra.mxu0 %v1489
        %1526 = vmatpush.bf16.msra.mxu0 %v1488
        %1527 = vmatpush.bf16.msra.mxu0 %v1487
        %1528 = vmatpush.bf16.msra.mxu0 %v1486
        %1529 = vmatpush.bf16.msra.mxu0 %v1485
        %1530 = vmatmul.bf16.gmra.mxu0 %v1379
        %v1531 = vpop.f32.mrf.mxu0
        %v1532 = vadd.f32 %v1519, %v1531
        %v1533 = vpop.f32.mrf.mxu0
        %1534 = vdwg.mxu0
        %v1535 = vadd.f32 %v1246, %v1532
        %1536 = vadd.xlane.f32.xlu0 %v1535
        %v1537 = vpop.xlane.xlu0 %1536
        %v1538 = vmul.f32 %v1537, %v1224
        %v1539 = vsub.f32 %v1535, %v1538
        %v1540 = vmul.f32 %v1539, %v1539
        %1541 = vadd.xlane.f32.xlu0 %v1540
        %v1542 = vpop.xlane.xlu0 %1541
        %v1543 = vmul.f32 %v1542, %v1224
        %v1544 = vadd.f32 %v1543, 1e-05
        %v1545 = vrsqrt.pop %v1544
        %v1546 = vmul.f32 %v1545, %v1544
        %v1547 = vmul.f32 %v1546, %v1545
        %v1548 = vmul.f32 0.5, %v1547
        %v1549 = vsub.f32 1.5, %v1548
        %v1550 = vmul.f32 %v1545, %v1549
        %vm1551 = vweird.f32 %v1544
        %vm1552 = vweird.f32 %v1545
        %vm1553 = vmor %vm1551, %vm1552
        %v1554 = vsel %vm1553, %v1545, %v1550
        %v1555 = vmul.f32 %v1539, %v1554
        %v1556 = vperm.slane %v531, 3
        %v1557 = vmul.f32 %v1555, %v1556
        %v1558 = vperm.slane %v531, 4
        %v1559 = vadd.f32 %v1557, %v1558
        %s1560 = scalar_lea.vmem %s8, 8
        %v1561 = vld [vmem:[%s1560] sm:$0x3f]
        %v1562 = vpack.c.bf16 %v1559, %v1559
        %s1563 = scalar_lea.vmem [#allocation3], 192
        %v1564 = vld [vmem:[%s1563] sm:$0xff]
        %v1565 = vld [vmem:[%s1563 + $0x8] sm:$0xf]
        %v1566 = vld [vmem:[%s1563 + $0xc] sm:$0xff]
        %v1567 = vld [vmem:[%s1563 + $0x14] sm:$0xf]
        %v1568 = vld [vmem:[%s1563 + $0x18] sm:$0xff]
        %v1569 = vld [vmem:[%s1563 + $0x20] sm:$0xf]
        %v1570 = vld [vmem:[%s1563 + $0x24] sm:$0xff]
        %v1571 = vld [vmem:[%s1563 + $0x2c] sm:$0xf]
        %v1572 = vld [vmem:[%s1563 + $0x30] sm:$0xff]
        %v1573 = vld [vmem:[%s1563 + $0x38] sm:$0xf]
        %v1574 = vld [vmem:[%s1563 + $0x3c] sm:$0xff]
        %v1575 = vld [vmem:[%s1563 + $0x44] sm:$0xf]
        %v1576 = vld [vmem:[%s1563 + $0x48] sm:$0xff]
        %v1577 = vld [vmem:[%s1563 + $0x50] sm:$0xf]
        %v1578 = vld [vmem:[%s1563 + $0x54] sm:$0xff]
        %v1579 = vld [vmem:[%s1563 + $0x5c] sm:$0xf]
        %v1580 = vld [vmem:[%s1563 + $0x60] sm:$0xff]
        %v1581 = vld [vmem:[%s1563 + $0x68] sm:$0xf]
        %v1582 = vld [vmem:[%s1563 + $0x6c] sm:$0xff]
        %v1583 = vld [vmem:[%s1563 + $0x74] sm:$0xf]
        %v1584 = vld [vmem:[%s1563 + $0x78] sm:$0xff]
        %v1585 = vld [vmem:[%s1563 + $0x80] sm:$0xf]
        %v1586 = vld [vmem:[%s1563 + $0x84] sm:$0xff]
        %v1587 = vld [vmem:[%s1563 + $0x8c] sm:$0xf]
        %v1588 = vld [vmem:[%s1563 + $0x90] sm:$0xff]
        %v1589 = vld [vmem:[%s1563 + $0x98] sm:$0xf]
        %v1590 = vld [vmem:[%s1563 + $0x9c] sm:$0xff]
        %v1591 = vld [vmem:[%s1563 + $0xa4] sm:$0xf]
        %v1592 = vld [vmem:[%s1563 + $0xa8] sm:$0xff]
        %v1593 = vld [vmem:[%s1563 + $0xb0] sm:$0xf]
        %v1594 = vld [vmem:[%s1563 + $0xb4] sm:$0xff]
        %v1595 = vld [vmem:[%s1563 + $0xbc] sm:$0xf]
        %s1596 = scalar_lea.vmem %s6, 3
        %v1597 = vld [vmem:[%s1596] sm:$0x7]
        %v1599 = vperm.slane %v1597, 0
        %v1600 = vperm.slane %v1597, 1
        %v1601 = vperm.slane %v1597, 2
        %v1637 = vunpack.c.l.b16 %v1564
        %v1638 = vunpack.c.h.b16 %v1564
        %v1639 = vunpack.c.l.b16 %v1565
        %v1640 = vunpack.c.l.b16 %v1566
        %v1641 = vunpack.c.h.b16 %v1566
        %v1642 = vunpack.c.l.b16 %v1567
        %v1643 = vunpack.c.l.b16 %v1568
        %v1644 = vunpack.c.h.b16 %v1568
        %v1645 = vunpack.c.l.b16 %v1569
        %v1646 = vunpack.c.l.b16 %v1570
        %v1647 = vunpack.c.h.b16 %v1570
        %v1648 = vunpack.c.l.b16 %v1571
        %v1649 = vunpack.c.l.b16 %v1572
        %v1650 = vunpack.c.h.b16 %v1572
        %v1651 = vunpack.c.l.b16 %v1573
        %v1652 = vunpack.c.l.b16 %v1574
        %v1653 = vunpack.c.h.b16 %v1574
        %v1654 = vunpack.c.l.b16 %v1575
        %v1655 = vunpack.c.l.b16 %v1576
        %v1656 = vunpack.c.h.b16 %v1576
        %v1657 = vunpack.c.l.b16 %v1577
        %v1658 = vunpack.c.l.b16 %v1578
        %v1659 = vunpack.c.h.b16 %v1578
        %v1660 = vunpack.c.l.b16 %v1579
        %v1661 = vunpack.c.l.b16 %v1580
        %v1662 = vunpack.c.h.b16 %v1580
        %v1663 = vunpack.c.l.b16 %v1581
        %v1664 = vunpack.c.l.b16 %v1582
        %v1665 = vunpack.c.h.b16 %v1582
        %v1666 = vunpack.c.l.b16 %v1583
        %v1667 = vunpack.c.l.b16 %v1584
        %v1668 = vunpack.c.h.b16 %v1584
        %v1669 = vunpack.c.l.b16 %v1585
        %v1670 = vunpack.c.l.b16 %v1586
        %v1671 = vunpack.c.h.b16 %v1586
        %v1672 = vunpack.c.l.b16 %v1587
        %v1673 = vunpack.c.l.b16 %v1588
        %v1674 = vunpack.c.h.b16 %v1588
        %v1675 = vunpack.c.l.b16 %v1589
        %v1676 = vunpack.c.l.b16 %v1590
        %v1677 = vunpack.c.h.b16 %v1590
        %v1678 = vunpack.c.l.b16 %v1591
        %v1679 = vunpack.c.l.b16 %v1592
        %v1680 = vunpack.c.h.b16 %v1592
        %v1681 = vunpack.c.l.b16 %v1593
        %v1682 = vunpack.c.l.b16 %v1594
        %v1683 = vunpack.c.h.b16 %v1594
        %v1684 = vunpack.c.l.b16 %v1595
        %v1685 = vpack.c.b16 %v1640, %v1637
        %v1686 = vpack.c.b16 %v1641, %v1638
        %v1687 = vpack.c.b16 %v1642, %v1639
        %v1688 = vpack.c.b16 %v1646, %v1643
        %v1689 = vpack.c.b16 %v1647, %v1644
        %v1690 = vpack.c.b16 %v1648, %v1645
        %v1691 = vpack.c.b16 %v1652, %v1649
        %v1692 = vpack.c.b16 %v1653, %v1650
        %v1693 = vpack.c.b16 %v1654, %v1651
        %v1694 = vpack.c.b16 %v1658, %v1655
        %v1695 = vpack.c.b16 %v1659, %v1656
        %v1696 = vpack.c.b16 %v1660, %v1657
        %v1697 = vpack.c.b16 %v1664, %v1661
        %v1698 = vpack.c.b16 %v1665, %v1662
        %v1699 = vpack.c.b16 %v1666, %v1663
        %v1700 = vpack.c.b16 %v1670, %v1667
        %v1701 = vpack.c.b16 %v1671, %v1668
        %v1702 = vpack.c.b16 %v1672, %v1669
        %v1703 = vpack.c.b16 %v1676, %v1673
        %v1704 = vpack.c.b16 %v1677, %v1674
        %v1705 = vpack.c.b16 %v1678, %v1675
        %v1706 = vpack.c.b16 %v1682, %v1679
        %v1707 = vpack.c.b16 %v1683, %v1680
        %v1708 = vpack.c.b16 %v1684, %v1681
        %1733 = vmatpush.bf16.msra.mxu0 %v1706
        %1734 = vmatpush.bf16.msra.mxu0 %v1703
        %1735 = vmatpush.bf16.msra.mxu0 %v1700
        %1736 = vmatpush.bf16.msra.mxu0 %v1697
        %1737 = vmatpush.bf16.msra.mxu0 %v1694
        %1738 = vmatpush.bf16.msra.mxu0 %v1691
        %1739 = vmatpush.bf16.msra.mxu0 %v1688
        %1740 = vmatpush.bf16.msra.mxu0 %v1685
        %1741 = vmatmul.bf16.gmra.mxu0 %v1562
        %v1742 = vpop.f32.mrf.mxu0
        %v1743 = vadd.f32 %v1599, %v1742
        %v1744 = vpop.f32.mrf.mxu0
        %1745 = vdwg.mxu0
        %1746 = vmatpush.bf16.msra.mxu0 %v1707
        %1747 = vmatpush.bf16.msra.mxu0 %v1704
        %1748 = vmatpush.bf16.msra.mxu0 %v1701
        %1749 = vmatpush.bf16.msra.mxu0 %v1698
        %1750 = vmatpush.bf16.msra.mxu0 %v1695
        %1751 = vmatpush.bf16.msra.mxu0 %v1692
        %1752 = vmatpush.bf16.msra.mxu0 %v1689
        %1753 = vmatpush.bf16.msra.mxu0 %v1686
        %1754 = vmatmul.bf16.gmra.mxu0 %v1562
        %v1755 = vpop.f32.mrf.mxu0
        %v1756 = vadd.f32 %v1600, %v1755
        %v1757 = vpop.f32.mrf.mxu0
        %1758 = vdwg.mxu0
        %1759 = vmatpush.bf16.msra.mxu0 %v1708
        %1760 = vmatpush.bf16.msra.mxu0 %v1705
        %1761 = vmatpush.bf16.msra.mxu0 %v1702
        %1762 = vmatpush.bf16.msra.mxu0 %v1699
        %1763 = vmatpush.bf16.msra.mxu0 %v1696
        %1764 = vmatpush.bf16.msra.mxu0 %v1693
        %1765 = vmatpush.bf16.msra.mxu0 %v1690
        %1766 = vmatpush.bf16.msra.mxu0 %v1687
        %1767 = vmatmul.bf16.gmra.mxu0 %v1562
        %v1768 = vpop.f32.mrf.mxu0
        %v1769 = vadd.f32 %v1601, %v1768
        %v1770 = vpop.f32.mrf.mxu0
        %1771 = vdwg.mxu0
        %v1773 = vrot.slane %v1743, 1
        %v1774 = vrot.slane %v1743, 2
        %v1775 = vrot.slane %v1743, 3
        %v1776 = vrot.slane %v1743, 4
        %v1777 = vrot.slane %v1743, 5
        %v1778 = vrot.slane %v1743, 6
        %v1779 = vrot.slane %v1743, 7
        %v1780 = vperm.slane %v1743, 0
        %v1781 = vperm.slane %v1773, 0
        %v1782 = vperm.slane %v1774, 0
        %v1783 = vperm.slane %v1775, 0
        %v1784 = vperm.slane %v1776, 0
        %v1785 = vperm.slane %v1777, 0
        %v1786 = vperm.slane %v1778, 0
        %v1787 = vperm.slane %v1779, 0
        %v1796 = vmul.f32 %v1780, %v1756
        %v1797 = vmul.f32 %v1781, %v1756
        %v1798 = vmul.f32 %v1782, %v1756
        %v1799 = vmul.f32 %v1783, %v1756
        %v1800 = vmul.f32 %v1784, %v1756
        %v1801 = vmul.f32 %v1785, %v1756
        %v1802 = vmul.f32 %v1786, %v1756
        %v1803 = vmul.f32 %v1787, %v1756
        %v1804 = vpack.c.bf16 %v1797, %v1796
        %v1805 = vpack.c.bf16 %v1799, %v1798
        %v1806 = vpack.c.bf16 %v1801, %v1800
        %v1807 = vpack.c.bf16 %v1803, %v1802
        %1808 = vmatpush.bf16.msra.mxu0 %v815
        %1809 = vmatpush.bf16.msra.mxu0 %v814
        %1810 = vmatpush.bf16.msra.mxu0 %v813
        %1811 = vmatpush.bf16.msra.mxu0 %v812
        %1812 = vmatpush.bf16.msra.mxu0 %v811
        %1813 = vmatpush.bf16.msra.mxu0 %v810
        %1814 = vmatpush.bf16.msra.mxu0 %v809
        %1815 = vmatpush.bf16.msra.mxu0 %v808
        %1816 = vmatmul.bf16.gmra.mxu0 %v1804
        %v1817 = vpop.f32.mrf.mxu0
        %v1818 = vadd.f32 0.0, %v1817
        %v1819 = vpop.f32.mrf.mxu0
        %v1820 = vadd.f32 0.0, %v1819
        %1821 = vmatmul.bf16.gmra.mxu0 %v1805
        %v1822 = vpop.f32.mrf.mxu0
        %v1823 = vadd.f32 0.0, %v1822
        %v1824 = vpop.f32.mrf.mxu0
        %v1825 = vadd.f32 0.0, %v1824
        %1826 = vmatmul.bf16.gmra.mxu0 %v1806
        %v1827 = vpop.f32.mrf.mxu0
        %v1828 = vadd.f32 0.0, %v1827
        %v1829 = vpop.f32.mrf.mxu0
        %v1830 = vadd.f32 0.0, %v1829
        %1831 = vmatmul.bf16.gmra.mxu0 %v1807
        %v1832 = vpop.f32.mrf.mxu0
        %v1833 = vadd.f32 0.0, %v1832
        %v1834 = vpop.f32.mrf.mxu0
        %v1835 = vadd.f32 0.0, %v1834
        %1836 = vdwg.mxu0
        %v1837 = vsel %vm853, %v1818, -inf
        %v1838 = vrot.slane %v1837, 4
        %v1839 = vmax.f32 %v1837, %v1838
        %v1840 = vrot.slane %v1839, 2
        %v1841 = vmax.f32 %v1839, %v1840
        %v1842 = vrot.slane %v1841, 1
        %v1843 = vmax.f32 %v1841, %v1842
        %v1844 = vsel %vm853, %v1820, -inf
        %v1845 = vrot.slane %v1844, 4
        %v1846 = vmax.f32 %v1844, %v1845
        %v1847 = vrot.slane %v1846, 2
        %v1848 = vmax.f32 %v1846, %v1847
        %v1849 = vrot.slane %v1848, 1
        %v1850 = vmax.f32 %v1848, %v1849
        %v1851 = vsel %vm853, %v1823, -inf
        %v1852 = vrot.slane %v1851, 4
        %v1853 = vmax.f32 %v1851, %v1852
        %v1854 = vrot.slane %v1853, 2
        %v1855 = vmax.f32 %v1853, %v1854
        %v1856 = vrot.slane %v1855, 1
        %v1857 = vmax.f32 %v1855, %v1856
        %v1858 = vsel %vm853, %v1825, -inf
        %v1859 = vrot.slane %v1858, 4
        %v1860 = vmax.f32 %v1858, %v1859
        %v1861 = vrot.slane %v1860, 2
        %v1862 = vmax.f32 %v1860, %v1861
        %v1863 = vrot.slane %v1862, 1
        %v1864 = vmax.f32 %v1862, %v1863
        %v1865 = vsel %vm853, %v1828, -inf
        %v1866 = vrot.slane %v1865, 4
        %v1867 = vmax.f32 %v1865, %v1866
        %v1868 = vrot.slane %v1867, 2
        %v1869 = vmax.f32 %v1867, %v1868
        %v1870 = vrot.slane %v1869, 1
        %v1871 = vmax.f32 %v1869, %v1870
        %v1872 = vsel %vm853, %v1830, -inf
        %v1873 = vrot.slane %v1872, 4
        %v1874 = vmax.f32 %v1872, %v1873
        %v1875 = vrot.slane %v1874, 2
        %v1876 = vmax.f32 %v1874, %v1875
        %v1877 = vrot.slane %v1876, 1
        %v1878 = vmax.f32 %v1876, %v1877
        %v1879 = vsel %vm853, %v1833, -inf
        %v1880 = vrot.slane %v1879, 4
        %v1881 = vmax.f32 %v1879, %v1880
        %v1882 = vrot.slane %v1881, 2
        %v1883 = vmax.f32 %v1881, %v1882
        %v1884 = vrot.slane %v1883, 1
        %v1885 = vmax.f32 %v1883, %v1884
        %v1886 = vsel %vm853, %v1835, -inf
        %v1887 = vrot.slane %v1886, 4
        %v1888 = vmax.f32 %v1886, %v1887
        %v1889 = vrot.slane %v1888, 2
        %v1890 = vmax.f32 %v1888, %v1889
        %v1891 = vrot.slane %v1890, 1
        %v1892 = vmax.f32 %v1890, %v1891
        %v1893 = vsub.f32 %v1818, %v1843
        %v1894 = vsub.f32 %v1820, %v1850
        %v1895 = vsub.f32 %v1823, %v1857
        %v1896 = vsub.f32 %v1825, %v1864
        %v1897 = vsub.f32 %v1828, %v1871
        %v1898 = vsub.f32 %v1830, %v1878
        %v1899 = vsub.f32 %v1833, %v1885
        %v1900 = vsub.f32 %v1835, %v1892
        %v1901 = vmul.f32 %v1893, 1.442695
        %v1902 = vpow.pop %v1901
        %v1903 = vmul.f32 %v1894, 1.442695
        %v1904 = vpow.pop %v1903
        %v1905 = vmul.f32 %v1895, 1.442695
        %v1906 = vpow.pop %v1905
        %v1907 = vmul.f32 %v1896, 1.442695
        %v1908 = vpow.pop %v1907
        %v1909 = vmul.f32 %v1897, 1.442695
        %v1910 = vpow.pop %v1909
        %v1911 = vmul.f32 %v1898, 1.442695
        %v1912 = vpow.pop %v1911
        %v1913 = vmul.f32 %v1899, 1.442695
        %v1914 = vpow.pop %v1913
        %v1915 = vmul.f32 %v1900, 1.442695
        %v1916 = vpow.pop %v1915
        %v1917 = vsel %vm853, %v1902, 0.0
        %v1918 = vrot.slane %v1917, 4
        %v1919 = vadd.f32 %v1917, %v1918
        %v1920 = vrot.slane %v1919, 2
        %v1921 = vadd.f32 %v1919, %v1920
        %v1922 = vrot.slane %v1921, 1
        %v1923 = vadd.f32 %v1921, %v1922
        %v1924 = vsel %vm853, %v1904, 0.0
        %v1925 = vrot.slane %v1924, 4
        %v1926 = vadd.f32 %v1924, %v1925
        %v1927 = vrot.slane %v1926, 2
        %v1928 = vadd.f32 %v1926, %v1927
        %v1929 = vrot.slane %v1928, 1
        %v1930 = vadd.f32 %v1928, %v1929
        %v1931 = vsel %vm853, %v1906, 0.0
        %v1932 = vrot.slane %v1931, 4
        %v1933 = vadd.f32 %v1931, %v1932
        %v1934 = vrot.slane %v1933, 2
        %v1935 = vadd.f32 %v1933, %v1934
        %v1936 = vrot.slane %v1935, 1
        %v1937 = vadd.f32 %v1935, %v1936
        %v1938 = vsel %vm853, %v1908, 0.0
        %v1939 = vrot.slane %v1938, 4
        %v1940 = vadd.f32 %v1938, %v1939
        %v1941 = vrot.slane %v1940, 2
        %v1942 = vadd.f32 %v1940, %v1941
        %v1943 = vrot.slane %v1942, 1
        %v1944 = vadd.f32 %v1942, %v1943
        %v1945 = vsel %vm853, %v1910, 0.0
        %v1946 = vrot.slane %v1945, 4
        %v1947 = vadd.f32 %v1945, %v1946
        %v1948 = vrot.slane %v1947, 2
        %v1949 = vadd.f32 %v1947, %v1948
        %v1950 = vrot.slane %v1949, 1
        %v1951 = vadd.f32 %v1949, %v1950
        %v1952 = vsel %vm853, %v1912, 0.0
        %v1953 = vrot.slane %v1952, 4
        %v1954 = vadd.f32 %v1952, %v1953
        %v1955 = vrot.slane %v1954, 2
        %v1956 = vadd.f32 %v1954, %v1955
        %v1957 = vrot.slane %v1956, 1
        %v1958 = vadd.f32 %v1956, %v1957
        %v1959 = vsel %vm853, %v1914, 0.0
        %v1960 = vrot.slane %v1959, 4
        %v1961 = vadd.f32 %v1959, %v1960
        %v1962 = vrot.slane %v1961, 2
        %v1963 = vadd.f32 %v1961, %v1962
        %v1964 = vrot.slane %v1963, 1
        %v1965 = vadd.f32 %v1963, %v1964
        %v1966 = vsel %vm853, %v1916, 0.0
        %v1967 = vrot.slane %v1966, 4
        %v1968 = vadd.f32 %v1966, %v1967
        %v1969 = vrot.slane %v1968, 2
        %v1970 = vadd.f32 %v1968, %v1969
        %v1971 = vrot.slane %v1970, 1
        %v1972 = vadd.f32 %v1970, %v1971
        %v1973 = vrcp.pop %v1923
        %v1974 = vrcp.pop %v1930
        %v1975 = vrcp.pop %v1937
        %v1976 = vrcp.pop %v1944
        %v1977 = vrcp.pop %v1951
        %v1978 = vrcp.pop %v1958
        %v1979 = vrcp.pop %v1965
        %v1980 = vrcp.pop %v1972
        %v1981 = vmul.f32 %v1902, %v1973
        %v1982 = vmul.f32 %v1904, %v1974
        %v1983 = vmul.f32 %v1906, %v1975
        %v1984 = vmul.f32 %v1908, %v1976
        %v1985 = vmul.f32 %v1910, %v1977
        %v1986 = vmul.f32 %v1912, %v1978
        %v1987 = vmul.f32 %v1914, %v1979
        %v1988 = vmul.f32 %v1916, %v1980
        %v1989 = vpack.c.bf16 %v1982, %v1981
        %v1990 = vpack.c.bf16 %v1984, %v1983
        %v1991 = vpack.c.bf16 %v1986, %v1985
        %v1992 = vpack.c.bf16 %v1988, %v1987
        %v1994 = vsel %vm853, %v1989, 0
        %v1997 = vsel %vm853, %v1990, 0
        %v2000 = vsel %vm853, %v1991, 0
        %v2003 = vsel %vm853, %v1992, 0
        %2005 = vmatpush.bf16.msra.mxu0 0
        %2006 = vmatpush.bf16.msra.mxu0 0
        %2007 = vmatpush.bf16.msra.mxu0 0
        %2008 = vmatpush.bf16.msra.mxu0 0
        %2009 = vmatpush.bf16.msra.mxu0 0
        %2010 = vmatpush.bf16.msra.mxu0 0
        %2011 = vmatpush.bf16.msra.mxu0 0
        %2012 = vmatpush.bf16.msra.mxu0 %v1024
        %2013 = vmatmul.bf16.gmra.mxu0 %v1994
        %v2014 = vpop.f32.mrf.mxu0
        %v2015 = vadd.f32 0.0, %v2014
        %v2016 = vpop.f32.mrf.mxu0
        %v2017 = vadd.f32 0.0, %v2016
        %2018 = vmatmul.bf16.gmra.mxu0 %v1997
        %v2019 = vpop.f32.mrf.mxu0
        %v2020 = vadd.f32 0.0, %v2019
        %v2021 = vpop.f32.mrf.mxu0
        %v2022 = vadd.f32 0.0, %v2021
        %2023 = vmatmul.bf16.gmra.mxu0 %v2000
        %v2024 = vpop.f32.mrf.mxu0
        %v2025 = vadd.f32 0.0, %v2024
        %v2026 = vpop.f32.mrf.mxu0
        %v2027 = vadd.f32 0.0, %v2026
        %2028 = vmatmul.bf16.gmra.mxu0 %v2003
        %v2029 = vpop.f32.mrf.mxu0
        %v2030 = vadd.f32 0.0, %v2029
        %v2031 = vpop.f32.mrf.mxu0
        %v2032 = vadd.f32 0.0, %v2031
        %2033 = vdwg.mxu0
        %v2034 = vmul.f32 %v2015, %v1769
        %v2035 = vmul.f32 %v2017, %v1769
        %v2036 = vmul.f32 %v2020, %v1769
        %v2037 = vmul.f32 %v2022, %v1769
        %v2038 = vmul.f32 %v2025, %v1769
        %v2039 = vmul.f32 %v2027, %v1769
        %v2040 = vmul.f32 %v2030, %v1769
        %v2041 = vmul.f32 %v2032, %v1769
        %v2042 = vrot.slane %v2034, 4
        %v2043 = vadd.f32 %v2034, %v2042
        %v2044 = vrot.slane %v2043, 2
        %v2045 = vadd.f32 %v2043, %v2044
        %v2046 = vrot.slane %v2045, 1
        %v2047 = vadd.f32 %v2045, %v2046
        %v2048 = vrot.slane %v2035, 4
        %v2049 = vadd.f32 %v2035, %v2048
        %v2050 = vrot.slane %v2049, 2
        %v2051 = vadd.f32 %v2049, %v2050
        %v2052 = vrot.slane %v2051, 1
        %v2053 = vadd.f32 %v2051, %v2052
        %v2054 = vrot.slane %v2036, 4
        %v2055 = vadd.f32 %v2036, %v2054
        %v2056 = vrot.slane %v2055, 2
        %v2057 = vadd.f32 %v2055, %v2056
        %v2058 = vrot.slane %v2057, 1
        %v2059 = vadd.f32 %v2057, %v2058
        %v2060 = vrot.slane %v2037, 4
        %v2061 = vadd.f32 %v2037, %v2060
        %v2062 = vrot.slane %v2061, 2
        %v2063 = vadd.f32 %v2061, %v2062
        %v2064 = vrot.slane %v2063, 1
        %v2065 = vadd.f32 %v2063, %v2064
        %v2066 = vrot.slane %v2038, 4
        %v2067 = vadd.f32 %v2038, %v2066
        %v2068 = vrot.slane %v2067, 2
        %v2069 = vadd.f32 %v2067, %v2068
        %v2070 = vrot.slane %v2069, 1
        %v2071 = vadd.f32 %v2069, %v2070
        %v2072 = vrot.slane %v2039, 4
        %v2073 = vadd.f32 %v2039, %v2072
        %v2074 = vrot.slane %v2073, 2
        %v2075 = vadd.f32 %v2073, %v2074
        %v2076 = vrot.slane %v2075, 1
        %v2077 = vadd.f32 %v2075, %v2076
        %v2078 = vrot.slane %v2040, 4
        %v2079 = vadd.f32 %v2040, %v2078
        %v2080 = vrot.slane %v2079, 2
        %v2081 = vadd.f32 %v2079, %v2080
        %v2082 = vrot.slane %v2081, 1
        %v2083 = vadd.f32 %v2081, %v2082
        %v2084 = vrot.slane %v2041, 4
        %v2085 = vadd.f32 %v2041, %v2084
        %v2086 = vrot.slane %v2085, 2
        %v2087 = vadd.f32 %v2085, %v2086
        %v2088 = vrot.slane %v2087, 1
        %v2089 = vadd.f32 %v2087, %v2088
        %v2098 = vsel %vm1119, %v2053, %v2047
        %v2099 = vsel %vm1121, %v2059, %v2098
        %v2100 = vsel %vm1123, %v2065, %v2099
        %v2101 = vsel %vm1125, %v2071, %v2100
        %v2102 = vsel %vm1127, %v2077, %v2101
        %v2103 = vsel %vm1129, %v2083, %v2102
        %v2104 = vsel %vm1131, %v2089, %v2103
        %2106 = vst [vmem:[#allocation2] sm:$0xff] %v2104
        %v2107 = vld [vmem:[#allocation2] sm:$0xff]
        %v2108 = vpack.c.bf16 %v2107, %v2107
        %s2109 = scalar_lea.vmem [#allocation6], 64
        %v2110 = vld [vmem:[%s2109] sm:$0xf]
        %v2111 = vld [vmem:[%s2109 + $0x4] sm:$0xf]
        %v2112 = vld [vmem:[%s2109 + $0x8] sm:$0xf]
        %v2113 = vld [vmem:[%s2109 + $0xc] sm:$0xf]
        %v2114 = vld [vmem:[%s2109 + $0x10] sm:$0xf]
        %v2115 = vld [vmem:[%s2109 + $0x14] sm:$0xf]
        %v2116 = vld [vmem:[%s2109 + $0x18] sm:$0xf]
        %v2117 = vld [vmem:[%s2109 + $0x1c] sm:$0xf]
        %v2118 = vld [vmem:[%s2109 + $0x20] sm:$0xf]
        %v2119 = vld [vmem:[%s2109 + $0x24] sm:$0xf]
        %v2120 = vld [vmem:[%s2109 + $0x28] sm:$0xf]
        %v2121 = vld [vmem:[%s2109 + $0x2c] sm:$0xf]
        %v2122 = vld [vmem:[%s2109 + $0x30] sm:$0xf]
        %v2123 = vld [vmem:[%s2109 + $0x34] sm:$0xf]
        %v2124 = vld [vmem:[%s2109 + $0x38] sm:$0xf]
        %v2125 = vld [vmem:[%s2109 + $0x3c] sm:$0xf]
        %v2126 = vperm.slane %v1561, 0
        %v2143 = vunpack.c.l.b16 %v2110
        %v2144 = vunpack.c.l.b16 %v2111
        %v2145 = vunpack.c.l.b16 %v2112
        %v2146 = vunpack.c.l.b16 %v2113
        %v2147 = vunpack.c.l.b16 %v2114
        %v2148 = vunpack.c.l.b16 %v2115
        %v2149 = vunpack.c.l.b16 %v2116
        %v2150 = vunpack.c.l.b16 %v2117
        %v2151 = vunpack.c.l.b16 %v2118
        %v2152 = vunpack.c.l.b16 %v2119
        %v2153 = vunpack.c.l.b16 %v2120
        %v2154 = vunpack.c.l.b16 %v2121
        %v2155 = vunpack.c.l.b16 %v2122
        %v2156 = vunpack.c.l.b16 %v2123
        %v2157 = vunpack.c.l.b16 %v2124
        %v2158 = vunpack.c.l.b16 %v2125
        %v2159 = vpack.c.b16 %v2144, %v2143
        %v2160 = vpack.c.b16 %v2146, %v2145
        %v2161 = vpack.c.b16 %v2148, %v2147
        %v2162 = vpack.c.b16 %v2150, %v2149
        %v2163 = vpack.c.b16 %v2152, %v2151
        %v2164 = vpack.c.b16 %v2154, %v2153
        %v2165 = vpack.c.b16 %v2156, %v2155
        %v2166 = vpack.c.b16 %v2158, %v2157
        %2175 = vmatpush.bf16.msra.mxu0 %v2166
        %2176 = vmatpush.bf16.msra.mxu0 %v2165
        %2177 = vmatpush.bf16.msra.mxu0 %v2164
        %2178 = vmatpush.bf16.msra.mxu0 %v2163
        %2179 = vmatpush.bf16.msra.mxu0 %v2162
        %2180 = vmatpush.bf16.msra.mxu0 %v2161
        %2181 = vmatpush.bf16.msra.mxu0 %v2160
        %2182 = vmatpush.bf16.msra.mxu0 %v2159
        %2183 = vmatmul.bf16.gmra.mxu0 %v2108
        %v2184 = vpop.f32.mrf.mxu0
        %v2185 = vadd.f32 %v2126, %v2184
        %v2186 = vpop.f32.mrf.mxu0
        %2187 = vdwg.mxu0
        %v2188 = vadd.f32 %v1559, %v2185
        %2189 = vadd.xlane.f32.xlu0 %v2188
        %v2190 = vpop.xlane.xlu0 %2189
        %v2191 = vmul.f32 %v2190, %v1224
        %v2192 = vsub.f32 %v2188, %v2191
        %v2193 = vmul.f32 %v2192, %v2192
        %2194 = vadd.xlane.f32.xlu0 %v2193
        %v2195 = vpop.xlane.xlu0 %2194
        %v2196 = vmul.f32 %v2195, %v1224
        %v2197 = vadd.f32 %v2196, 1e-05
        %v2198 = vrsqrt.pop %v2197
        %v2199 = vmul.f32 %v2198, %v2197
        %v2200 = vmul.f32 %v2199, %v2198
        %v2201 = vmul.f32 0.5, %v2200
        %v2202 = vsub.f32 1.5, %v2201
        %v2203 = vmul.f32 %v2198, %v2202
        %vm2204 = vweird.f32 %v2197
        %vm2205 = vweird.f32 %v2198
        %vm2206 = vmor %vm2204, %vm2205
        %v2207 = vsel %vm2206, %v2198, %v2203
        %v2208 = vmul.f32 %v2192, %v2207
        %v2209 = vperm.slane %v1561, 1
        %v2210 = vmul.f32 %v2208, %v2209
        %v2211 = vperm.slane %v1561, 2
        %v2212 = vadd.f32 %v2210, %v2211
        %v2213 = vpack.c.bf16 %v2212, %v2212
        %s2214 = scalar_lea.vmem [#allocation8], 128
        %v2215 = vld [vmem:[%s2214] sm:$0xff]
        %v2216 = vld [vmem:[%s2214 + $0x8] sm:$0xff]
        %v2217 = vld [vmem:[%s2214 + $0x10] sm:$0xff]
        %v2218 = vld [vmem:[%s2214 + $0x18] sm:$0xff]
        %v2219 = vld [vmem:[%s2214 + $0x20] sm:$0xff]
        %v2220 = vld [vmem:[%s2214 + $0x28] sm:$0xff]
        %v2221 = vld [vmem:[%s2214 + $0x30] sm:$0xff]
        %v2222 = vld [vmem:[%s2214 + $0x38] sm:$0xff]
        %v2223 = vld [vmem:[%s2214 + $0x40] sm:$0xff]
        %v2224 = vld [vmem:[%s2214 + $0x48] sm:$0xff]
        %v2225 = vld [vmem:[%s2214 + $0x50] sm:$0xff]
        %v2226 = vld [vmem:[%s2214 + $0x58] sm:$0xff]
        %v2227 = vld [vmem:[%s2214 + $0x60] sm:$0xff]
        %v2228 = vld [vmem:[%s2214 + $0x68] sm:$0xff]
        %v2229 = vld [vmem:[%s2214 + $0x70] sm:$0xff]
        %v2230 = vld [vmem:[%s2214 + $0x78] sm:$0xff]
        %s2231 = scalar_lea.vmem %s10, 2
        %v2232 = vld [vmem:[%s2231] sm:$0x3]
        %v2234 = vperm.slane %v2232, 0
        %v2235 = vperm.slane %v2232, 1
        %v2254 = vunpack.c.l.b16 %v2215
        %v2255 = vunpack.c.h.b16 %v2215
        %v2256 = vunpack.c.l.b16 %v2216
        %v2257 = vunpack.c.h.b16 %v2216
        %v2258 = vunpack.c.l.b16 %v2217
        %v2259 = vunpack.c.h.b16 %v2217
        %v2260 = vunpack.c.l.b16 %v2218
        %v2261 = vunpack.c.h.b16 %v2218
        %v2262 = vunpack.c.l.b16 %v2219
        %v2263 = vunpack.c.h.b16 %v2219
        %v2264 = vunpack.c.l.b16 %v2220
        %v2265 = vunpack.c.h.b16 %v2220
        %v2266 = vunpack.c.l.b16 %v2221
        %v2267 = vunpack.c.h.b16 %v2221
        %v2268 = vunpack.c.l.b16 %v2222
        %v2269 = vunpack.c.h.b16 %v2222
        %v2270 = vunpack.c.l.b16 %v2223
        %v2271 = vunpack.c.h.b16 %v2223
        %v2272 = vunpack.c.l.b16 %v2224
        %v2273 = vunpack.c.h.b16 %v2224
        %v2274 = vunpack.c.l.b16 %v2225
        %v2275 = vunpack.c.h.b16 %v2225
        %v2276 = vunpack.c.l.b16 %v2226
        %v2277 = vunpack.c.h.b16 %v2226
        %v2278 = vunpack.c.l.b16 %v2227
        %v2279 = vunpack.c.h.b16 %v2227
        %v2280 = vunpack.c.l.b16 %v2228
        %v2281 = vunpack.c.h.b16 %v2228
        %v2282 = vunpack.c.l.b16 %v2229
        %v2283 = vunpack.c.h.b16 %v2229
        %v2284 = vunpack.c.l.b16 %v2230
        %v2285 = vunpack.c.h.b16 %v2230
        %v2286 = vpack.c.b16 %v2256, %v2254
        %v2287 = vpack.c.b16 %v2257, %v2255
        %v2288 = vpack.c.b16 %v2260, %v2258
        %v2289 = vpack.c.b16 %v2261, %v2259
        %v2290 = vpack.c.b16 %v2264, %v2262
        %v2291 = vpack.c.b16 %v2265, %v2263
        %v2292 = vpack.c.b16 %v2268, %v2266
        %v2293 = vpack.c.b16 %v2269, %v2267
        %v2294 = vpack.c.b16 %v2272, %v2270
        %v2295 = vpack.c.b16 %v2273, %v2271
        %v2296 = vpack.c.b16 %v2276, %v2274
        %v2297 = vpack.c.b16 %v2277, %v2275
        %v2298 = vpack.c.b16 %v2280, %v2278
        %v2299 = vpack.c.b16 %v2281, %v2279
        %v2300 = vpack.c.b16 %v2284, %v2282
        %v2301 = vpack.c.b16 %v2285, %v2283
        %2318 = vmatpush.bf16.msra.mxu0 %v2300
        %2319 = vmatpush.bf16.msra.mxu0 %v2298
        %2320 = vmatpush.bf16.msra.mxu0 %v2296
        %2321 = vmatpush.bf16.msra.mxu0 %v2294
        %2322 = vmatpush.bf16.msra.mxu0 %v2292
        %2323 = vmatpush.bf16.msra.mxu0 %v2290
        %2324 = vmatpush.bf16.msra.mxu0 %v2288
        %2325 = vmatpush.bf16.msra.mxu0 %v2286
        %2326 = vmatmul.bf16.gmra.mxu0 %v2213
        %v2327 = vpop.f32.mrf.mxu0
        %v2328 = vadd.f32 %v2234, %v2327
        %v2329 = vpop.f32.mrf.mxu0
        %2330 = vdwg.mxu0
        %2331 = vmatpush.bf16.msra.mxu0 %v2301
        %2332 = vmatpush.bf16.msra.mxu0 %v2299
        %2333 = vmatpush.bf16.msra.mxu0 %v2297
        %2334 = vmatpush.bf16.msra.mxu0 %v2295
        %2335 = vmatpush.bf16.msra.mxu0 %v2293
        %2336 = vmatpush.bf16.msra.mxu0 %v2291
        %2337 = vmatpush.bf16.msra.mxu0 %v2289
        %2338 = vmatpush.bf16.msra.mxu0 %v2287
        %2339 = vmatmul.bf16.gmra.mxu0 %v2213
        %v2340 = vpop.f32.mrf.mxu0
        %v2341 = vadd.f32 %v2235, %v2340
        %v2342 = vpop.f32.mrf.mxu0
        %2343 = vdwg.mxu0
        %v2344 = vmax.f32 %v2328, 0.0
        %v2345 = vmax.f32 %v2341, 0.0
        %v2346 = vpack.c.bf16 %v2344, %v2344
        %v2347 = vpack.c.bf16 %v2345, %v2345
        %s2348 = scalar_lea.vmem [#allocation9], 128
        %v2349 = vld [vmem:[%s2348] sm:$0xf]
        %v2350 = vld [vmem:[%s2348 + $0x4] sm:$0xf]
        %v2351 = vld [vmem:[%s2348 + $0x8] sm:$0xf]
        %v2352 = vld [vmem:[%s2348 + $0xc] sm:$0xf]
        %v2353 = vld [vmem:[%s2348 + $0x10] sm:$0xf]
        %v2354 = vld [vmem:[%s2348 + $0x14] sm:$0xf]
        %v2355 = vld [vmem:[%s2348 + $0x18] sm:$0xf]
        %v2356 = vld [vmem:[%s2348 + $0x1c] sm:$0xf]
        %v2357 = vld [vmem:[%s2348 + $0x20] sm:$0xf]
        %v2358 = vld [vmem:[%s2348 + $0x24] sm:$0xf]
        %v2359 = vld [vmem:[%s2348 + $0x28] sm:$0xf]
        %v2360 = vld [vmem:[%s2348 + $0x2c] sm:$0xf]
        %v2361 = vld [vmem:[%s2348 + $0x30] sm:$0xf]
        %v2362 = vld [vmem:[%s2348 + $0x34] sm:$0xf]
        %v2363 = vld [vmem:[%s2348 + $0x38] sm:$0xf]
        %v2364 = vld [vmem:[%s2348 + $0x3c] sm:$0xf]
        %v2365 = vld [vmem:[%s2348 + $0x40] sm:$0xf]
        %v2366 = vld [vmem:[%s2348 + $0x44] sm:$0xf]
        %v2367 = vld [vmem:[%s2348 + $0x48] sm:$0xf]
        %v2368 = vld [vmem:[%s2348 + $0x4c] sm:$0xf]
        %v2369 = vld [vmem:[%s2348 + $0x50] sm:$0xf]
        %v2370 = vld [vmem:[%s2348 + $0x54] sm:$0xf]
        %v2371 = vld [vmem:[%s2348 + $0x58] sm:$0xf]
        %v2372 = vld [vmem:[%s2348 + $0x5c] sm:$0xf]
        %v2373 = vld [vmem:[%s2348 + $0x60] sm:$0xf]
        %v2374 = vld [vmem:[%s2348 + $0x64] sm:$0xf]
        %v2375 = vld [vmem:[%s2348 + $0x68] sm:$0xf]
        %v2376 = vld [vmem:[%s2348 + $0x6c] sm:$0xf]
        %v2377 = vld [vmem:[%s2348 + $0x70] sm:$0xf]
        %v2378 = vld [vmem:[%s2348 + $0x74] sm:$0xf]
        %v2379 = vld [vmem:[%s2348 + $0x78] sm:$0xf]
        %v2380 = vld [vmem:[%s2348 + $0x7c] sm:$0xf]
        %v2381 = vperm.slane %v1561, 5
        %v2414 = vunpack.c.l.b16 %v2349
        %v2415 = vunpack.c.l.b16 %v2350
        %v2416 = vunpack.c.l.b16 %v2351
        %v2417 = vunpack.c.l.b16 %v2352
        %v2418 = vunpack.c.l.b16 %v2353
        %v2419 = vunpack.c.l.b16 %v2354
        %v2420 = vunpack.c.l.b16 %v2355
        %v2421 = vunpack.c.l.b16 %v2356
        %v2422 = vunpack.c.l.b16 %v2357
        %v2423 = vunpack.c.l.b16 %v2358
        %v2424 = vunpack.c.l.b16 %v2359
        %v2425 = vunpack.c.l.b16 %v2360
        %v2426 = vunpack.c.l.b16 %v2361
        %v2427 = vunpack.c.l.b16 %v2362
        %v2428 = vunpack.c.l.b16 %v2363
        %v2429 = vunpack.c.l.b16 %v2364
        %v2430 = vunpack.c.l.b16 %v2365
        %v2431 = vunpack.c.l.b16 %v2366
        %v2432 = vunpack.c.l.b16 %v2367
        %v2433 = vunpack.c.l.b16 %v2368
        %v2434 = vunpack.c.l.b16 %v2369
        %v2435 = vunpack.c.l.b16 %v2370
        %v2436 = vunpack.c.l.b16 %v2371
        %v2437 = vunpack.c.l.b16 %v2372
        %v2438 = vunpack.c.l.b16 %v2373
        %v2439 = vunpack.c.l.b16 %v2374
        %v2440 = vunpack.c.l.b16 %v2375
        %v2441 = vunpack.c.l.b16 %v2376
        %v2442 = vunpack.c.l.b16 %v2377
        %v2443 = vunpack.c.l.b16 %v2378
        %v2444 = vunpack.c.l.b16 %v2379
        %v2445 = vunpack.c.l.b16 %v2380
        %v2446 = vpack.c.b16 %v2415, %v2414
        %v2447 = vpack.c.b16 %v2417, %v2416
        %v2448 = vpack.c.b16 %v2419, %v2418
        %v2449 = vpack.c.b16 %v2421, %v2420
        %v2450 = vpack.c.b16 %v2423, %v2422
        %v2451 = vpack.c.b16 %v2425, %v2424
        %v2452 = vpack.c.b16 %v2427, %v2426
        %v2453 = vpack.c.b16 %v2429, %v2428
        %v2454 = vpack.c.b16 %v2431, %v2430
        %v2455 = vpack.c.b16 %v2433, %v2432
        %v2456 = vpack.c.b16 %v2435, %v2434
        %v2457 = vpack.c.b16 %v2437, %v2436
        %v2458 = vpack.c.b16 %v2439, %v2438
        %v2459 = vpack.c.b16 %v2441, %v2440
        %v2460 = vpack.c.b16 %v2443, %v2442
        %v2461 = vpack.c.b16 %v2445, %v2444
        %2478 = vmatpush.bf16.msra.mxu0 %v2453
        %2479 = vmatpush.bf16.msra.mxu0 %v2452
        %2480 = vmatpush.bf16.msra.mxu0 %v2451
        %2481 = vmatpush.bf16.msra.mxu0 %v2450
        %2482 = vmatpush.bf16.msra.mxu0 %v2449
        %2483 = vmatpush.bf16.msra.mxu0 %v2448
        %2484 = vmatpush.bf16.msra.mxu0 %v2447
        %2485 = vmatpush.bf16.msra.mxu0 %v2446
        %2486 = vmatmul.bf16.gmra.mxu0 %v2346
        %v2487 = vpop.f32.mrf.mxu0
        %v2488 = vadd.f32 %v2381, %v2487
        %v2489 = vpop.f32.mrf.mxu0
        %2490 = vdwg.mxu0
        %2491 = vmatpush.bf16.msra.mxu0 %v2461
        %2492 = vmatpush.bf16.msra.mxu0 %v2460
        %2493 = vmatpush.bf16.msra.mxu0 %v2459
        %2494 = vmatpush.bf16.msra.mxu0 %v2458
        %2495 = vmatpush.bf16.msra.mxu0 %v2457
        %2496 = vmatpush.bf16.msra.mxu0 %v2456
        %2497 = vmatpush.bf16.msra.mxu0 %v2455
        %2498 = vmatpush.bf16.msra.mxu0 %v2454
        %2499 = vmatmul.bf16.gmra.mxu0 %v2347
        %v2500 = vpop.f32.mrf.mxu0
        %v2501 = vadd.f32 %v2488, %v2500
        %v2502 = vpop.f32.mrf.mxu0
        %2503 = vdwg.mxu0
        %v2504 = vadd.f32 %v2212, %v2501
        %2505 = vadd.xlane.f32.xlu0 %v2504
        %v2506 = vpop.xlane.xlu0 %2505
        %v2507 = vmul.f32 %v2506, %v1224
        %v2508 = vsub.f32 %v2504, %v2507
        %v2509 = vmul.f32 %v2508, %v2508
        %2510 = vadd.xlane.f32.xlu0 %v2509
        %v2511 = vpop.xlane.xlu0 %2510
        %v2512 = vmul.f32 %v2511, %v1224
        %v2513 = vadd.f32 %v2512, 1e-05
        %v2514 = vrsqrt.pop %v2513
        %v2515 = vmul.f32 %v2514, %v2513
        %v2516 = vmul.f32 %v2515, %v2514
        %v2517 = vmul.f32 0.5, %v2516
        %v2518 = vsub.f32 1.5, %v2517
        %v2519 = vmul.f32 %v2514, %v2518
        %vm2520 = vweird.f32 %v2513
        %vm2521 = vweird.f32 %v2514
        %vm2522 = vmor %vm2520, %vm2521
        %v2523 = vsel %vm2522, %v2514, %v2519
        %v2524 = vmul.f32 %v2508, %v2523
        %v2525 = vperm.slane %v1561, 3
        %v2526 = vmul.f32 %v2524, %v2525
        %v2527 = vperm.slane %v1561, 4
        %v2528 = vadd.f32 %v2526, %v2527
        %v2529 = vrot.slane %v2528, 4
        %v2530 = vadd.f32 %v2528, %v2529
        %v2531 = vrot.slane %v2530, 2
        %v2532 = vadd.f32 %v2530, %v2531
        %v2533 = vrot.slane %v2532, 1
        %v2534 = vadd.f32 %v2532, %v2533
        %v2535 = vmul.f32 %v2534, 0.125
        %2536 = vst [vmem:[%s470] sm:$0x1] %v2535
        %s2537 = sand.u32 %s294, 1
        %s2538 = scalar_lea.sflag [#allocation5], %s2537
        %s2539 = sand.u32 %s294, 1
        %s2540 = scalar_lea.vmem [#allocation11], %s2539
        // Predicated region
        $region85: #{tpu_custom_call.1} parent=67 // pred_check
          %p2541 = pneg %p304
        $region86: #{tpu_custom_call.1} parent=67 // pred_check_branch
          %2543 = sbr.rel (%p2541) target = $region88
        $region87: #{tpu_custom_call.1} parent=67 // pred_region
          %2545 = vsyncadd %s2538, 0
          %s2546 = scalar_lea.hbm %s12, %s29
          %s2548 = sshll.u32 %s2540, 4
          %s2549 = int_to_ptr.vmem [resolvable:$true] %s2548
          %s2550 = sshll.u32 %s2546, 4
          %s2551 = int_to_ptr.hbm [resolvable:$true] %s2550
          %2553 = dma.vmem_to_hbm [thread:$0]  %s2549, 16, %s2551, %s2538
        $region88: #{tpu_custom_call.1} parent=67 // pred_fallthru
          _
      $region68: #{tpu_custom_call.1} parent=5 // pred_fallthru
        _
      %p2554 = scmp.le.s32.totalorder 2, %s24
      // Predicated region
      $region89: #{tpu_custom_call.1} parent=5 // pred_check
        %p2555 = pneg %p2554
      $region90: #{tpu_custom_call.1} parent=5 // pred_check_branch
        %2557 = sbr.rel (%p2555) target = $region92
      $region91: #{tpu_custom_call.1} parent=5 // pred_region
        %s2558 = ssub.s32 %s24, 2
        // Predicated region
        $region93: #{tpu_custom_call.1} parent=91 // pred_check
          %p2559 = pneg %p310
        $region94: #{tpu_custom_call.1} parent=91 // pred_check_branch
          %2561 = sbr.rel (%p2559) target = $region96
        $region95: #{tpu_custom_call.1} parent=91 // pred_region
          %s2562 = sand.u32 %s295, 1
          %s2563 = scalar_lea.sflag [#allocation5], %s2562
          %s2564 = sand.u32 %s295, 1
          %s2565 = scalar_lea.vmem [#allocation11], %s2564
          %2567 = dma.done %s2563, 16
        $region96: #{tpu_custom_call.1} parent=91 // pred_fallthru
          _
      $region92: #{tpu_custom_call.1} parent=5 // pred_fallthru
        _
    $region6: #{tpu_custom_call.1} parent=1 // loop_footer
      %s28 = sadd.s32 1, %s24
    $region7: #{tpu_custom_call.1} parent=1 // loop_footer_branch
      %23 = sbr.rel target = $region3
    $region8: #{tpu_custom_call.1} parent=1 // loop_exit
      _
    %2568 = vsyncpa [#allocation4], 1
    %s2569 = scalar_lea.sflag [#allocation4], 1
    %2570 = vsyncpa %s2569, 1
    %2571 = vsyncpa [#allocation7], 1
    %2572 = vsyncpa [#allocation10], 1
    %2573 = vsyncpa [#allocation5], 1
    %s2574 = scalar_lea.sflag [#allocation5], 1
    %2575 = vsyncpa %s2574, 1

</llo_original>
